<compile_context>
chip_gen: v6e
topology: v6e:2x2x1
jax: 0.10.0
libtpu: 0.0.40
codegen_flags: <defaults>
</compile_context>

<pallas_src>
import functools

import numpy as np
import jax
import jax.numpy as jnp
from jax.experimental import pallas as pl
from jax.experimental.pallas import tpu as pltpu

_CPAD = 128  # lane-dense padded class dim / output slab width


def _round_up(n, m):
    return ((n + m - 1) // m) * m


def _vmem_spec():
    return pl.BlockSpec(memory_space=pltpu.MemorySpace.VMEM)


# ----------------------------------------------------------------------------
# Slab layouts (row offsets are 8-aligned so every in-kernel slice is aligned)
# ----------------------------------------------------------------------------
def _slab_layout_a(SW, H2, T_PAD):
    offs, r = {}, 0
    for name, n in (("wxf", SW), ("wxb", SW), ("wh", H2), ("w2", H2),
                    ("bg", 1), ("b2", 1), ("y", T_PAD)):
        offs[name] = r
        r += _round_up(n, 8)
    return offs, _round_up(r, 8)


def _slab_layout_b(Dtok, H2, LT):
    offs, r = {}, 0
    for name, n in (("wenc", Dtok), ("benc", 1), ("dummy", 1), ("w1", H2),
                    ("b1", 1), ("mask", LT), ("selp", 2 * LT), ("seld", 2 * LT)):
        offs[name] = r
        r += _round_up(n, 8)
    return offs, _round_up(r, 8)


# ----------------------------------------------------------------------------
# Fused kernel builder (cached per static-dims bucket -> single Mosaic compile)
# ----------------------------------------------------------------------------
@functools.lru_cache(maxsize=None)
def _build_forward(SW, Henc, H2, Dtok, T_PAD, L_PAD, CPAD):
    LT = L_PAD * T_PAD
    n4 = 4 * H2
    WA = max(n4, CPAD)
    offa, RA = _slab_layout_a(SW, H2, T_PAD)
    offb, RB = _slab_layout_b(Dtok, H2, LT)

    def kernel(x_ref, a_ref, b_ref, out_ref):
        # ---- static, 8-aligned slab slices (views, no data movement) --------
        wxf = a_ref[offa["wxf"]:offa["wxf"] + SW, 0:n4]      # fwd-context rows of fused Wx
        wxb = a_ref[offa["wxb"]:offa["wxb"] + SW, 0:n4]      # bwd-context rows of fused Wx
        whh = a_ref[offa["wh"]:offa["wh"] + H2, 0:n4]        # fused recurrent weights (H2, 4*H2)
        w2 = a_ref[offa["w2"]:offa["w2"] + H2, 0:CPAD]
        bg = a_ref[offa["bg"]:offa["bg"] + 1, 0:n4]
        b2 = a_ref[offa["b2"]:offa["b2"] + 1, 0:CPAD]
        y1h = a_ref[offa["y"]:offa["y"] + T_PAD, 0:CPAD]     # one-hot labels * 1/T_real

        wenc = b_ref[offb["wenc"]:offb["wenc"] + Dtok, :]    # mean-pool folded in
        benc = b_ref[offb["benc"]:offb["benc"] + 1, :]
        dummy = b_ref[offb["dummy"]:offb["dummy"] + 1, :]
        w1 = b_ref[offb["w1"]:offb["w1"] + H2, 0:H2]
        b1 = b_ref[offb["b1"]:offb["b1"] + 1, 0:H2]
        msk = b_ref[offb["mask"]:offb["mask"] + LT, 0:H2] > 0.5
        selp = b_ref[offb["selp"]:offb["selp"] + 2 * LT, :]  # one-hot paragraph selection
        seld = b_ref[offb["seld"]:offb["seld"] + 2 * LT, :]  # dummy-node selection (row-replicated)

        # ---- 1) paragraph encoder (mean-pool folded into wenc host-side) ----
        para = jnp.tanh(
            jnp.dot(x_ref[...], wenc, preferred_element_type=jnp.float32) + benc
        )                                                     # (SW, SW); pad rows never selected

        # ---- 2) gather/pack as one one-hot matmul (+ dummy node row) --------
        gathered = (jnp.dot(selp, para, preferred_element_type=jnp.float32)
                    + seld * dummy)                           # (2*LT, SW): [fwd rows ; bwd rows]

        # ---- 3) BiLSTM: fused input projection, one dot per recurrent step --
        xg = (jnp.dot(gathered[0:LT], wxf, preferred_element_type=jnp.float32)
              + jnp.dot(gathered[LT:2 * LT], wxb, preferred_element_type=jnp.float32)
              + bg)                                           # (LT, 4*H2) lane-dense

        h = jnp.zeros((T_PAD, H2), jnp.float32)               # [h_fwd | h_bwd]
        c = jnp.zeros((T_PAD, H2), jnp.float32)
        for t in range(L_PAD):                                # static unroll, L_PAD small
            s0 = t * T_PAD
            pre = xg[s0:s0 + T_PAD] + jnp.dot(h, whh, preferred_element_type=jnp.float32)
            i_g = jax.nn.sigmoid(pre[:, 0:H2])
            f_g = jax.nn.sigmoid(pre[:, H2:2 * H2])
            g_g = jnp.tanh(pre[:, 2 * H2:3 * H2])
            o_g = jax.nn.sigmoid(pre[:, 3 * H2:4 * H2])
            c_new = f_g * c + i_g * g_g
            h_new = o_g * jnp.tanh(c_new)
            m = msk[s0:s0 + T_PAD]                            # freeze padded steps
            h = jnp.where(m, h_new, h)
            c = jnp.where(m, c_new, c)
        # h == concat(h_n_forward, h_n_backward)   (packed-sequence semantics)

        # ---- 4) classifier (Linear -> Tanh -> Linear) + mean CrossEntropy ---
        hid = jnp.tanh(jnp.dot(h, w1, preferred_element_type=jnp.float32) + b1)
        logits = jnp.dot(hid, w2, preferred_element_type=jnp.float32) + b2   # (T_PAD, CPAD)
        mx = jnp.max(logits, axis=-1, keepdims=True)
        lse = jnp.log(jnp.sum(jnp.exp(logits - mx), axis=-1, keepdims=True)) + mx
        nll = jnp.sum(y1h * (lse - logits), axis=-1, keepdims=True)          # (T_PAD, 1)
        loss = jnp.sum(nll, axis=0, keepdims=True)                           # (1, 1), 1/T folded in

        # lane-dense output slab: rows [0,T_PAD) logits, rows [T_PAD,2*T_PAD) loss
        out_ref[0:T_PAD, :] = logits
        out_ref[T_PAD:2 * T_PAD, :] = jnp.broadcast_to(loss, (T_PAD, CPAD))

    call = pl.pallas_call(
        kernel,
        out_shape=jax.ShapeDtypeStruct((2 * T_PAD, CPAD), jnp.float32),
        in_specs=[_vmem_spec(), _vmem_spec(), _vmem_spec()],
        out_specs=_vmem_spec(),
    )
    return jax.jit(call), (offa, RA, WA), (offb, RB)


# ----------------------------------------------------------------------------
# Full forward (training branch): host-side packing + one kernel launch
# ----------------------------------------------------------------------------
def put_or_skip_forward(input_embeddings, training_tuple_ids, params,
                        parent_relation_dims):
    x = jnp.asarray(input_embeddings[0], jnp.float32)         # (P, Ttok, E)
    P, Ttok, E = x.shape
    Dtok = Ttok * E

    tuples = training_tuple_ids[0]
    T_real = len(tuples)
    lengths = [len(c) for c, _ in tuples]
    labels = [int(lab) for _, lab in tuples]
    L_real = max(lengths)

    Henc = params["enc_w"].shape[1]
    HL = params["whh_f"].shape[0]
    H2 = 2 * HL
    C = parent_relation_dims + 2
    CPAD = _CPAD

    # static, 8-aligned buckets (same compile reused across documents)
    T_PAD = _round_up(T_real, 8)
    L_PAD = _round_up(L_real, 8)
    SW = _round_up(max(Henc, H2, P), 8)   # narrow-slab width == paragraph-table rows
    LT = L_PAD * T_PAD
    n4 = 4 * H2
    WA = max(n4, CPAD)

    fwd, (offa, RA, _), (offb, RB) = _build_forward(SW, Henc, H2, Dtok, T_PAD, L_PAD, CPAD)

    # ---- host-side weight fusion (one-time) ---------------------------------
    def gate(w, g):
        return w[:, g * HL:(g + 1) * HL]

    def bdiag(a, b):
        za = jnp.zeros((a.shape[0], b.shape[1]), jnp.float32)
        zb = jnp.zeros((b.shape[0], a.shape[1]), jnp.float32)
        return jnp.concatenate([jnp.concatenate([a, za], axis=1),
                                jnp.concatenate([zb, b], axis=1)], axis=0)

    wx_all = jnp.concatenate(
        [bdiag(gate(params["wih_f"], g), gate(params["wih_b"], g)) for g in range(4)],
        axis=1)                                               # (2*Henc, 4*H2)
    wh_all = jnp.concatenate(
        [bdiag(gate(params["whh_f"], g), gate(params["whh_b"], g)) for g in range(4)],
        axis=1)                                               # (H2, 4*H2)
    bg_all = jnp.concatenate(
        [jnp.concatenate([gate(params["b_f"], g), gate(params["b_b"], g)], axis=1)
         for g in range(4)], axis=1)                          # (1, 4*H2)

    wenc = jnp.tile(params["enc_w"] / float(Ttok), (Ttok, 1))  # mean-pool folded in
    w2p = jnp.zeros((H2, CPAD), jnp.float32).at[:, :C].set(params["w2"])
    b2p = jnp.full((1, CPAD), -1e9, jnp.float32).at[:, :C].set(params["b2"])  # finite pad bias!

    # ---- host-side gather / mask / label tables ------------------------------
    selp = np.zeros((2 * LT, SW), np.float32)   # one-hot paragraph selection (fwd rows ; bwd rows)
    seld = np.zeros((2 * LT, SW), np.float32)   # dummy-node selection, row-replicated
    mask = np.zeros((LT, H2), np.float32)       # per-step validity, fwd lanes [:HL], bwd [HL:]
    y1h = np.zeros((T_PAD, CPAD), np.float32)   # one-hot labels scaled by 1/T_real (mean CE)
    for r in range(T_real):
        y1h[r, labels[r]] = 1.0 / float(T_real)
        cids = list(tuples[r][0])
        ln = len(cids)
        for t in range(L_PAD):
            row = t * T_PAD + r
            if t < ln:                                       # forward direction
                mask[row, :HL] = 1.0
                cid = cids[t]
                if cid < 0:
                    seld[row, :] = 1.0                       # context id -1 -> dummy node
                else:
                    selp[row, cid] = 1.0
            tb = L_PAD - 1 - t
            if tb < ln:                                      # backward direction
                mask[row, HL:] = 1.0
                cid = cids[tb]
                if cid < 0:
                    seld[LT + row, :] = 1.0
                else:
                    selp[LT + row, cid] = 1.0

    # ---- pack everything into 3 VMEM inputs ----------------------------------
    slab_a = jnp.zeros((RA, WA), jnp.float32)
    for name, arr in (("wxf", wx_all[:Henc]), ("wxb", wx_all[Henc:]),
                      ("wh", wh_all), ("w2", w2p), ("bg", bg_all),
                      ("b2", b2p), ("y", jnp.asarray(y1h))):
        slab_a = slab_a.at[offa[name]:offa[name] + arr.shape[0], :arr.shape[1]].set(arr)

    slab_b = jnp.zeros((RB, SW), jnp.float32)
    for name, arr in (("wenc", wenc), ("benc", params["enc_b"]),
                      ("dummy", params["dummy"].reshape(1, Henc)),
                      ("w1", params["w1"]), ("b1", params["b1"]),
                      ("mask", jnp.asarray(mask)), ("selp", jnp.asarray(selp)),
                      ("seld", jnp.asarray(seld))):
        slab_b = slab_b.at[offb[name]:offb[name] + arr.shape[0], :arr.shape[1]].set(arr)

    x_pad = jnp.zeros((SW, Dtok), jnp.float32).at[:P, :].set(x.reshape(P, Dtok))

    slab_out = fwd(x_pad, slab_a, slab_b)
    return {"loss": slab_out[T_PAD, 0], "logits": slab_out[:T_real, :C]}


# ----------------------------------------------------------------------------
# Deterministic parameter construction (PyTorch-layout) + example run
# ----------------------------------------------------------------------------
def init_params(key, emb_dim, hidden_dim, lstm_hidden, num_classes):
    ks = jax.random.split(key, 12)
    s = 0.1
    final = 2 * lstm_hidden
    return {
        "enc_w": s * jax.random.normal(ks[0], (emb_dim, hidden_dim), jnp.float32),
        "enc_b": s * jax.random.normal(ks[1], (1, hidden_dim), jnp.float32),
        "dummy": jax.random.normal(ks[2], (hidden_dim,), jnp.float32),
        "wih_f": s * jax.random.normal(ks[3], (hidden_dim, 4 * lstm_hidden), jnp.float32),
        "whh_f": s * jax.random.normal(ks[4], (lstm_hidden, 4 * lstm_hidden), jnp.float32),
        "b_f":   s * jax.random.normal(ks[5], (1, 4 * lstm_hidden), jnp.float32),
        "wih_b": s * jax.random.normal(ks[6], (hidden_dim, 4 * lstm_hidden), jnp.float32),
        "whh_b": s * jax.random.normal(ks[7], (lstm_hidden, 4 * lstm_hidden), jnp.float32),
        "b_b":   s * jax.random.normal(ks[8], (1, 4 * lstm_hidden), jnp.float32),
        "w1":    s * jax.random.normal(ks[9], (final, final), jnp.float32),
        "b1":    jnp.zeros((1, final), jnp.float32),
        "w2":    s * jax.random.normal(ks[10], (final, num_classes), jnp.float32),
        "b2":    jnp.zeros((1, num_classes), jnp.float32),
    }


if __name__ == "__main__":
    batch = 1
    num_para = 6
    num_token = 8
    emb_dim = 32            # token embedding dim
    hidden_dim = 32         # paragraph_encoder.hidden_dim
    lstm_hidden = 16        # args.hidden_dim
    parent_relation_dims = 4
    num_classes = parent_relation_dims + 2

    key = jax.random.PRNGKey(0)
    k_in, k_par = jax.random.split(key)
    input_embeddings = jax.random.normal(
        k_in, (batch, num_para, num_token, emb_dim), jnp.float32)

    # training_tuple_ids: [((context_ids), label), ...] for one document
    training_tuple_ids = [[((0, 1, 2), 1),
                           ((0, 1), 0),
                           ((0, 1, 2, 3), 2),
                           ((0,), parent_relation_dims + 1)]]

    params = init_params(k_par, emb_dim, hidden_dim, lstm_hidden, num_classes)

    out = put_or_skip_forward(input_embeddings, training_tuple_ids, params,
                              parent_relation_dims)
    jax.block_until_ready(out["loss"])
    jax.block_until_ready(out["logits"])
    print("KERNEL_OK")
</pallas_src>

<mosaic_0001>
module attributes {stable_mosaic.version = 11 : i64} {
  func.func @kernel(%arg0: memref<32x256xf32, #tpu.memory_space<vmem>>, %arg1: memref<152x128xf32, #tpu.memory_space<vmem>>, %arg2: memref<632x32xf32, #tpu.memory_space<vmem>>, %arg3: memref<16x128xf32, #tpu.memory_space<vmem>>) attributes {dimension_semantics = [], scalar_prefetch = 0 : i64, scratch_operands = 0 : i64, tpu.core_type = #tpu.core_type<tc>} {
    %c0 = arith.constant 0 : index
    %c0_0 = arith.constant 0 : index
    %0 = vector.load %arg1[%c0, %c0_0] : memref<152x128xf32, #tpu.memory_space<vmem>>, vector<32x128xf32>
    %c32 = arith.constant 32 : index
    %c0_1 = arith.constant 0 : index
    %1 = vector.load %arg1[%c32, %c0_1] : memref<152x128xf32, #tpu.memory_space<vmem>>, vector<32x128xf32>
    %c64 = arith.constant 64 : index
    %c0_2 = arith.constant 0 : index
    %2 = vector.load %arg1[%c64, %c0_2] : memref<152x128xf32, #tpu.memory_space<vmem>>, vector<32x128xf32>
    %c96 = arith.constant 96 : index
    %c0_3 = arith.constant 0 : index
    %3 = vector.load %arg1[%c96, %c0_3] : memref<152x128xf32, #tpu.memory_space<vmem>>, vector<32x128xf32>
    %c128 = arith.constant 128 : index
    %c0_4 = arith.constant 0 : index
    %4 = vector.load %arg1[%c128, %c0_4] : memref<152x128xf32, #tpu.memory_space<vmem>>, vector<1x128xf32>
    %c136 = arith.constant 136 : index
    %c0_5 = arith.constant 0 : index
    %5 = vector.load %arg1[%c136, %c0_5] : memref<152x128xf32, #tpu.memory_space<vmem>>, vector<1x128xf32>
    %c144 = arith.constant 144 : index
    %c0_6 = arith.constant 0 : index
    %6 = vector.load %arg1[%c144, %c0_6] : memref<152x128xf32, #tpu.memory_space<vmem>>, vector<8x128xf32>
    %c0_7 = arith.constant 0 : index
    %c0_8 = arith.constant 0 : index
    %7 = vector.load %arg2[%c0_7, %c0_8] : memref<632x32xf32, #tpu.memory_space<vmem>>, vector<256x32xf32>
    %c256 = arith.constant 256 : index
    %c0_9 = arith.constant 0 : index
    %8 = vector.load %arg2[%c256, %c0_9] : memref<632x32xf32, #tpu.memory_space<vmem>>, vector<1x32xf32>
    %c264 = arith.constant 264 : index
    %c0_10 = arith.constant 0 : index
    %9 = vector.load %arg2[%c264, %c0_10] : memref<632x32xf32, #tpu.memory_space<vmem>>, vector<1x32xf32>
    %c272 = arith.constant 272 : index
    %c0_11 = arith.constant 0 : index
    %10 = vector.load %arg2[%c272, %c0_11] : memref<632x32xf32, #tpu.memory_space<vmem>>, vector<32x32xf32>
    %c304 = arith.constant 304 : index
    %c0_12 = arith.constant 0 : index
    %11 = vector.load %arg2[%c304, %c0_12] : memref<632x32xf32, #tpu.memory_space<vmem>>, vector<1x32xf32>
    %c312 = arith.constant 312 : index
    %c0_13 = arith.constant 0 : index
    %12 = vector.load %arg2[%c312, %c0_13] : memref<632x32xf32, #tpu.memory_space<vmem>>, vector<64x32xf32>
    %cst = arith.constant 5.000000e-01 : f32
    %13 = vector.broadcast %cst : f32 to vector<64x32xf32>
    %14 = arith.cmpf ogt, %12, %13 : vector<64x32xf32>
    %c376 = arith.constant 376 : index
    %c0_14 = arith.constant 0 : index
    %15 = vector.load %arg2[%c376, %c0_14] : memref<632x32xf32, #tpu.memory_space<vmem>>, vector<128x32xf32>
    %c504 = arith.constant 504 : index
    %c0_15 = arith.constant 0 : index
    %16 = vector.load %arg2[%c504, %c0_15] : memref<632x32xf32, #tpu.memory_space<vmem>>, vector<128x32xf32>
    %c0_16 = arith.constant 0 : index
    %c0_17 = arith.constant 0 : index
    %17 = vector.load %arg0[%c0_16, %c0_17] : memref<32x256xf32, #tpu.memory_space<vmem>>, vector<32x256xf32>
    %cst_18 = arith.constant dense<0.000000e+00> : vector<32x32xf32>
    %18 = tpu.matmul %17, %7, %cst_18 {dimension_numbers = #tpu.dot_dimension_numbers<[1], [0], [0], [1], [0, 0, 1, 1], [], []>} : vector<32x256xf32>, vector<256x32xf32>, vector<32x32xf32> -> vector<32x32xf32>
    %19 = vector.broadcast %8 : vector<1x32xf32> to vector<32x32xf32>
    %20 = arith.addf %18, %19 : vector<32x32xf32>
    %21 = math.tanh %20 : vector<32x32xf32>
    %cst_19 = arith.constant dense<0.000000e+00> : vector<128x32xf32>
    %22 = tpu.matmul %15, %21, %cst_19 {dimension_numbers = #tpu.dot_dimension_numbers<[1], [0], [0], [1], [0, 0, 1, 1], [], []>} : vector<128x32xf32>, vector<32x32xf32>, vector<128x32xf32> -> vector<128x32xf32>
    %23 = vector.broadcast %9 : vector<1x32xf32> to vector<128x32xf32>
    %24 = arith.mulf %16, %23 : vector<128x32xf32>
    %25 = arith.addf %22, %24 : vector<128x32xf32>
    %26 = vector.extract_strided_slice %25 {offsets = [0, 0], sizes = [64, 32], strides = [1, 1]} : vector<128x32xf32> to vector<64x32xf32>
    %cst_20 = arith.constant dense<0.000000e+00> : vector<64x128xf32>
    %27 = tpu.matmul %26, %0, %cst_20 {dimension_numbers = #tpu.dot_dimension_numbers<[1], [0], [0], [1], [0, 0, 1, 1], [], []>} : vector<64x32xf32>, vector<32x128xf32>, vector<64x128xf32> -> vector<64x128xf32>
    %28 = vector.extract_strided_slice %25 {offsets = [64, 0], sizes = [64, 32], strides = [1, 1]} : vector<128x32xf32> to vector<64x32xf32>
    %cst_21 = arith.constant dense<0.000000e+00> : vector<64x128xf32>
    %29 = tpu.matmul %28, %1, %cst_21 {dimension_numbers = #tpu.dot_dimension_numbers<[1], [0], [0], [1], [0, 0, 1, 1], [], []>} : vector<64x32xf32>, vector<32x128xf32>, vector<64x128xf32> -> vector<64x128xf32>
    %30 = arith.addf %27, %29 : vector<64x128xf32>
    %31 = vector.broadcast %4 : vector<1x128xf32> to vector<64x128xf32>
    %32 = arith.addf %30, %31 : vector<64x128xf32>
    %cst_22 = arith.constant 0.000000e+00 : f32
    %33 = vector.broadcast %cst_22 : f32 to vector<8x32xf32>
    %cst_23 = arith.constant 0.000000e+00 : f32
    %34 = vector.broadcast %cst_23 : f32 to vector<8x32xf32>
    %35 = vector.extract_strided_slice %32 {offsets = [0, 0], sizes = [8, 128], strides = [1, 1]} : vector<64x128xf32> to vector<8x128xf32>
    %cst_24 = arith.constant dense<0.000000e+00> : vector<8x128xf32>
    %36 = tpu.matmul %33, %2, %cst_24 {dimension_numbers = #tpu.dot_dimension_numbers<[1], [0], [0], [1], [0, 0, 1, 1], [], []>} : vector<8x32xf32>, vector<32x128xf32>, vector<8x128xf32> -> vector<8x128xf32>
    %37 = arith.addf %35, %36 : vector<8x128xf32>
    %38 = vector.extract_strided_slice %37 {offsets = [0, 0], sizes = [8, 32], strides = [1, 1]} : vector<8x128xf32> to vector<8x32xf32>
    %39 = arith.negf %38 : vector<8x32xf32>
    %40 = math.exp %39 : vector<8x32xf32>
    %cst_25 = arith.constant 1.000000e+00 : f32
    %41 = vector.broadcast %cst_25 : f32 to vector<8x32xf32>
    %42 = arith.addf %41, %40 : vector<8x32xf32>
    %43 = arith.divf %41, %42 : vector<8x32xf32>
    %44 = vector.extract_strided_slice %37 {offsets = [0, 32], sizes = [8, 32], strides = [1, 1]} : vector<8x128xf32> to vector<8x32xf32>
    %45 = arith.negf %44 : vector<8x32xf32>
    %46 = math.exp %45 : vector<8x32xf32>
    %cst_26 = arith.constant 1.000000e+00 : f32
    %47 = vector.broadcast %cst_26 : f32 to vector<8x32xf32>
    %48 = arith.addf %47, %46 : vector<8x32xf32>
    %49 = arith.divf %47, %48 : vector<8x32xf32>
    %50 = vector.extract_strided_slice %37 {offsets = [0, 64], sizes = [8, 32], strides = [1, 1]} : vector<8x128xf32> to vector<8x32xf32>
    %51 = math.tanh %50 : vector<8x32xf32>
    %52 = vector.extract_strided_slice %37 {offsets = [0, 96], sizes = [8, 32], strides = [1, 1]} : vector<8x128xf32> to vector<8x32xf32>
    %53 = arith.negf %52 : vector<8x32xf32>
    %54 = math.exp %53 : vector<8x32xf32>
    %cst_27 = arith.constant 1.000000e+00 : f32
    %55 = vector.broadcast %cst_27 : f32 to vector<8x32xf32>
    %56 = arith.addf %55, %54 : vector<8x32xf32>
    %57 = arith.divf %55, %56 : vector<8x32xf32>
    %58 = arith.mulf %49, %34 : vector<8x32xf32>
    %59 = arith.mulf %43, %51 : vector<8x32xf32>
    %60 = arith.addf %58, %59 : vector<8x32xf32>
    %61 = math.tanh %60 : vector<8x32xf32>
    %62 = arith.mulf %57, %61 : vector<8x32xf32>
    %63 = vector.extract_strided_slice %14 {offsets = [0, 0], sizes = [8, 32], strides = [1, 1]} : vector<64x32xi1> to vector<8x32xi1>
    %64 = arith.select %63, %62, %33 : vector<8x32xi1>, vector<8x32xf32>
    %65 = arith.select %63, %60, %34 : vector<8x32xi1>, vector<8x32xf32>
    %66 = vector.extract_strided_slice %32 {offsets = [8, 0], sizes = [8, 128], strides = [1, 1]} : vector<64x128xf32> to vector<8x128xf32>
    %cst_28 = arith.constant dense<0.000000e+00> : vector<8x128xf32>
    %67 = tpu.matmul %64, %2, %cst_28 {dimension_numbers = #tpu.dot_dimension_numbers<[1], [0], [0], [1], [0, 0, 1, 1], [], []>} : vector<8x32xf32>, vector<32x128xf32>, vector<8x128xf32> -> vector<8x128xf32>
    %68 = arith.addf %66, %67 : vector<8x128xf32>
    %69 = vector.extract_strided_slice %68 {offsets = [0, 0], sizes = [8, 32], strides = [1, 1]} : vector<8x128xf32> to vector<8x32xf32>
    %70 = arith.negf %69 : vector<8x32xf32>
    %71 = math.exp %70 : vector<8x32xf32>
    %cst_29 = arith.constant 1.000000e+00 : f32
    %72 = vector.broadcast %cst_29 : f32 to vector<8x32xf32>
    %73 = arith.addf %72, %71 : vector<8x32xf32>
    %74 = arith.divf %72, %73 : vector<8x32xf32>
    %75 = vector.extract_strided_slice %68 {offsets = [0, 32], sizes = [8, 32], strides = [1, 1]} : vector<8x128xf32> to vector<8x32xf32>
    %76 = arith.negf %75 : vector<8x32xf32>
    %77 = math.exp %76 : vector<8x32xf32>
    %cst_30 = arith.constant 1.000000e+00 : f32
    %78 = vector.broadcast %cst_30 : f32 to vector<8x32xf32>
    %79 = arith.addf %78, %77 : vector<8x32xf32>
    %80 = arith.divf %78, %79 : vector<8x32xf32>
    %81 = vector.extract_strided_slice %68 {offsets = [0, 64], sizes = [8, 32], strides = [1, 1]} : vector<8x128xf32> to vector<8x32xf32>
    %82 = math.tanh %81 : vector<8x32xf32>
    %83 = vector.extract_strided_slice %68 {offsets = [0, 96], sizes = [8, 32], strides = [1, 1]} : vector<8x128xf32> to vector<8x32xf32>
    %84 = arith.negf %83 : vector<8x32xf32>
    %85 = math.exp %84 : vector<8x32xf32>
    %cst_31 = arith.constant 1.000000e+00 : f32
    %86 = vector.broadcast %cst_31 : f32 to vector<8x32xf32>
    %87 = arith.addf %86, %85 : vector<8x32xf32>
    %88 = arith.divf %86, %87 : vector<8x32xf32>
    %89 = arith.mulf %80, %65 : vector<8x32xf32>
    %90 = arith.mulf %74, %82 : vector<8x32xf32>
    %91 = arith.addf %89, %90 : vector<8x32xf32>
    %92 = math.tanh %91 : vector<8x32xf32>
    %93 = arith.mulf %88, %92 : vector<8x32xf32>
    %94 = vector.extract_strided_slice %14 {offsets = [8, 0], sizes = [8, 32], strides = [1, 1]} : vector<64x32xi1> to vector<8x32xi1>
    %95 = arith.select %94, %93, %64 : vector<8x32xi1>, vector<8x32xf32>
    %96 = arith.select %94, %91, %65 : vector<8x32xi1>, vector<8x32xf32>
    %97 = vector.extract_strided_slice %32 {offsets = [16, 0], sizes = [8, 128], strides = [1, 1]} : vector<64x128xf32> to vector<8x128xf32>
    %cst_32 = arith.constant dense<0.000000e+00> : vector<8x128xf32>
    %98 = tpu.matmul %95, %2, %cst_32 {dimension_numbers = #tpu.dot_dimension_numbers<[1], [0], [0], [1], [0, 0, 1, 1], [], []>} : vector<8x32xf32>, vector<32x128xf32>, vector<8x128xf32> -> vector<8x128xf32>
    %99 = arith.addf %97, %98 : vector<8x128xf32>
    %100 = vector.extract_strided_slice %99 {offsets = [0, 0], sizes = [8, 32], strides = [1, 1]} : vector<8x128xf32> to vector<8x32xf32>
    %101 = arith.negf %100 : vector<8x32xf32>
    %102 = math.exp %101 : vector<8x32xf32>
    %cst_33 = arith.constant 1.000000e+00 : f32
    %103 = vector.broadcast %cst_33 : f32 to vector<8x32xf32>
    %104 = arith.addf %103, %102 : vector<8x32xf32>
    %105 = arith.divf %103, %104 : vector<8x32xf32>
    %106 = vector.extract_strided_slice %99 {offsets = [0, 32], sizes = [8, 32], strides = [1, 1]} : vector<8x128xf32> to vector<8x32xf32>
    %107 = arith.negf %106 : vector<8x32xf32>
    %108 = math.exp %107 : vector<8x32xf32>
    %cst_34 = arith.constant 1.000000e+00 : f32
    %109 = vector.broadcast %cst_34 : f32 to vector<8x32xf32>
    %110 = arith.addf %109, %108 : vector<8x32xf32>
    %111 = arith.divf %109, %110 : vector<8x32xf32>
    %112 = vector.extract_strided_slice %99 {offsets = [0, 64], sizes = [8, 32], strides = [1, 1]} : vector<8x128xf32> to vector<8x32xf32>
    %113 = math.tanh %112 : vector<8x32xf32>
    %114 = vector.extract_strided_slice %99 {offsets = [0, 96], sizes = [8, 32], strides = [1, 1]} : vector<8x128xf32> to vector<8x32xf32>
    %115 = arith.negf %114 : vector<8x32xf32>
    %116 = math.exp %115 : vector<8x32xf32>
    %cst_35 = arith.constant 1.000000e+00 : f32
    %117 = vector.broadcast %cst_35 : f32 to vector<8x32xf32>
    %118 = arith.addf %117, %116 : vector<8x32xf32>
    %119 = arith.divf %117, %118 : vector<8x32xf32>
    %120 = arith.mulf %111, %96 : vector<8x32xf32>
    %121 = arith.mulf %105, %113 : vector<8x32xf32>
    %122 = arith.addf %120, %121 : vector<8x32xf32>
    %123 = math.tanh %122 : vector<8x32xf32>
    %124 = arith.mulf %119, %123 : vector<8x32xf32>
    %125 = vector.extract_strided_slice %14 {offsets = [16, 0], sizes = [8, 32], strides = [1, 1]} : vector<64x32xi1> to vector<8x32xi1>
    %126 = arith.select %125, %124, %95 : vector<8x32xi1>, vector<8x32xf32>
    %127 = arith.select %125, %122, %96 : vector<8x32xi1>, vector<8x32xf32>
    %128 = vector.extract_strided_slice %32 {offsets = [24, 0], sizes = [8, 128], strides = [1, 1]} : vector<64x128xf32> to vector<8x128xf32>
    %cst_36 = arith.constant dense<0.000000e+00> : vector<8x128xf32>
    %129 = tpu.matmul %126, %2, %cst_36 {dimension_numbers = #tpu.dot_dimension_numbers<[1], [0], [0], [1], [0, 0, 1, 1], [], []>} : vector<8x32xf32>, vector<32x128xf32>, vector<8x128xf32> -> vector<8x128xf32>
    %130 = arith.addf %128, %129 : vector<8x128xf32>
    %131 = vector.extract_strided_slice %130 {offsets = [0, 0], sizes = [8, 32], strides = [1, 1]} : vector<8x128xf32> to vector<8x32xf32>
    %132 = arith.negf %131 : vector<8x32xf32>
    %133 = math.exp %132 : vector<8x32xf32>
    %cst_37 = arith.constant 1.000000e+00 : f32
    %134 = vector.broadcast %cst_37 : f32 to vector<8x32xf32>
    %135 = arith.addf %134, %133 : vector<8x32xf32>
    %136 = arith.divf %134, %135 : vector<8x32xf32>
    %137 = vector.extract_strided_slice %130 {offsets = [0, 32], sizes = [8, 32], strides = [1, 1]} : vector<8x128xf32> to vector<8x32xf32>
    %138 = arith.negf %137 : vector<8x32xf32>
    %139 = math.exp %138 : vector<8x32xf32>
    %cst_38 = arith.constant 1.000000e+00 : f32
    %140 = vector.broadcast %cst_38 : f32 to vector<8x32xf32>
    %141 = arith.addf %140, %139 : vector<8x32xf32>
    %142 = arith.divf %140, %141 : vector<8x32xf32>
    %143 = vector.extract_strided_slice %130 {offsets = [0, 64], sizes = [8, 32], strides = [1, 1]} : vector<8x128xf32> to vector<8x32xf32>
    %144 = math.tanh %143 : vector<8x32xf32>
    %145 = vector.extract_strided_slice %130 {offsets = [0, 96], sizes = [8, 32], strides = [1, 1]} : vector<8x128xf32> to vector<8x32xf32>
    %146 = arith.negf %145 : vector<8x32xf32>
    %147 = math.exp %146 : vector<8x32xf32>
    %cst_39 = arith.constant 1.000000e+00 : f32
    %148 = vector.broadcast %cst_39 : f32 to vector<8x32xf32>
    %149 = arith.addf %148, %147 : vector<8x32xf32>
    %150 = arith.divf %148, %149 : vector<8x32xf32>
    %151 = arith.mulf %142, %127 : vector<8x32xf32>
    %152 = arith.mulf %136, %144 : vector<8x32xf32>
    %153 = arith.addf %151, %152 : vector<8x32xf32>
    %154 = math.tanh %153 : vector<8x32xf32>
    %155 = arith.mulf %150, %154 : vector<8x32xf32>
    %156 = vector.extract_strided_slice %14 {offsets = [24, 0], sizes = [8, 32], strides = [1, 1]} : vector<64x32xi1> to vector<8x32xi1>
    %157 = arith.select %156, %155, %126 : vector<8x32xi1>, vector<8x32xf32>
    %158 = arith.select %156, %153, %127 : vector<8x32xi1>, vector<8x32xf32>
    %159 = vector.extract_strided_slice %32 {offsets = [32, 0], sizes = [8, 128], strides = [1, 1]} : vector<64x128xf32> to vector<8x128xf32>
    %cst_40 = arith.constant dense<0.000000e+00> : vector<8x128xf32>
    %160 = tpu.matmul %157, %2, %cst_40 {dimension_numbers = #tpu.dot_dimension_numbers<[1], [0], [0], [1], [0, 0, 1, 1], [], []>} : vector<8x32xf32>, vector<32x128xf32>, vector<8x128xf32> -> vector<8x128xf32>
    %161 = arith.addf %159, %160 : vector<8x128xf32>
    %162 = vector.extract_strided_slice %161 {offsets = [0, 0], sizes = [8, 32], strides = [1, 1]} : vector<8x128xf32> to vector<8x32xf32>
    %163 = arith.negf %162 : vector<8x32xf32>
    %164 = math.exp %163 : vector<8x32xf32>
    %cst_41 = arith.constant 1.000000e+00 : f32
    %165 = vector.broadcast %cst_41 : f32 to vector<8x32xf32>
    %166 = arith.addf %165, %164 : vector<8x32xf32>
    %167 = arith.divf %165, %166 : vector<8x32xf32>
    %168 = vector.extract_strided_slice %161 {offsets = [0, 32], sizes = [8, 32], strides = [1, 1]} : vector<8x128xf32> to vector<8x32xf32>
    %169 = arith.negf %168 : vector<8x32xf32>
    %170 = math.exp %169 : vector<8x32xf32>
    %cst_42 = arith.constant 1.000000e+00 : f32
    %171 = vector.broadcast %cst_42 : f32 to vector<8x32xf32>
    %172 = arith.addf %171, %170 : vector<8x32xf32>
    %173 = arith.divf %171, %172 : vector<8x32xf32>
    %174 = vector.extract_strided_slice %161 {offsets = [0, 64], sizes = [8, 32], strides = [1, 1]} : vector<8x128xf32> to vector<8x32xf32>
    %175 = math.tanh %174 : vector<8x32xf32>
    %176 = vector.extract_strided_slice %161 {offsets = [0, 96], sizes = [8, 32], strides = [1, 1]} : vector<8x128xf32> to vector<8x32xf32>
    %177 = arith.negf %176 : vector<8x32xf32>
    %178 = math.exp %177 : vector<8x32xf32>
    %cst_43 = arith.constant 1.000000e+00 : f32
    %179 = vector.broadcast %cst_43 : f32 to vector<8x32xf32>
    %180 = arith.addf %179, %178 : vector<8x32xf32>
    %181 = arith.divf %179, %180 : vector<8x32xf32>
    %182 = arith.mulf %173, %158 : vector<8x32xf32>
    %183 = arith.mulf %167, %175 : vector<8x32xf32>
    %184 = arith.addf %182, %183 : vector<8x32xf32>
    %185 = math.tanh %184 : vector<8x32xf32>
    %186 = arith.mulf %181, %185 : vector<8x32xf32>
    %187 = vector.extract_strided_slice %14 {offsets = [32, 0], sizes = [8, 32], strides = [1, 1]} : vector<64x32xi1> to vector<8x32xi1>
    %188 = arith.select %187, %186, %157 : vector<8x32xi1>, vector<8x32xf32>
    %189 = arith.select %187, %184, %158 : vector<8x32xi1>, vector<8x32xf32>
    %190 = vector.extract_strided_slice %32 {offsets = [40, 0], sizes = [8, 128], strides = [1, 1]} : vector<64x128xf32> to vector<8x128xf32>
    %cst_44 = arith.constant dense<0.000000e+00> : vector<8x128xf32>
    %191 = tpu.matmul %188, %2, %cst_44 {dimension_numbers = #tpu.dot_dimension_numbers<[1], [0], [0], [1], [0, 0, 1, 1], [], []>} : vector<8x32xf32>, vector<32x128xf32>, vector<8x128xf32> -> vector<8x128xf32>
    %192 = arith.addf %190, %191 : vector<8x128xf32>
    %193 = vector.extract_strided_slice %192 {offsets = [0, 0], sizes = [8, 32], strides = [1, 1]} : vector<8x128xf32> to vector<8x32xf32>
    %194 = arith.negf %193 : vector<8x32xf32>
    %195 = math.exp %194 : vector<8x32xf32>
    %cst_45 = arith.constant 1.000000e+00 : f32
    %196 = vector.broadcast %cst_45 : f32 to vector<8x32xf32>
    %197 = arith.addf %196, %195 : vector<8x32xf32>
    %198 = arith.divf %196, %197 : vector<8x32xf32>
    %199 = vector.extract_strided_slice %192 {offsets = [0, 32], sizes = [8, 32], strides = [1, 1]} : vector<8x128xf32> to vector<8x32xf32>
    %200 = arith.negf %199 : vector<8x32xf32>
    %201 = math.exp %200 : vector<8x32xf32>
    %cst_46 = arith.constant 1.000000e+00 : f32
    %202 = vector.broadcast %cst_46 : f32 to vector<8x32xf32>
    %203 = arith.addf %202, %201 : vector<8x32xf32>
    %204 = arith.divf %202, %203 : vector<8x32xf32>
    %205 = vector.extract_strided_slice %192 {offsets = [0, 64], sizes = [8, 32], strides = [1, 1]} : vector<8x128xf32> to vector<8x32xf32>
    %206 = math.tanh %205 : vector<8x32xf32>
    %207 = vector.extract_strided_slice %192 {offsets = [0, 96], sizes = [8, 32], strides = [1, 1]} : vector<8x128xf32> to vector<8x32xf32>
    %208 = arith.negf %207 : vector<8x32xf32>
    %209 = math.exp %208 : vector<8x32xf32>
    %cst_47 = arith.constant 1.000000e+00 : f32
    %210 = vector.broadcast %cst_47 : f32 to vector<8x32xf32>
    %211 = arith.addf %210, %209 : vector<8x32xf32>
    %212 = arith.divf %210, %211 : vector<8x32xf32>
    %213 = arith.mulf %204, %189 : vector<8x32xf32>
    %214 = arith.mulf %198, %206 : vector<8x32xf32>
    %215 = arith.addf %213, %214 : vector<8x32xf32>
    %216 = math.tanh %215 : vector<8x32xf32>
    %217 = arith.mulf %212, %216 : vector<8x32xf32>
    %218 = vector.extract_strided_slice %14 {offsets = [40, 0], sizes = [8, 32], strides = [1, 1]} : vector<64x32xi1> to vector<8x32xi1>
    %219 = arith.select %218, %217, %188 : vector<8x32xi1>, vector<8x32xf32>
    %220 = arith.select %218, %215, %189 : vector<8x32xi1>, vector<8x32xf32>
    %221 = vector.extract_strided_slice %32 {offsets = [48, 0], sizes = [8, 128], strides = [1, 1]} : vector<64x128xf32> to vector<8x128xf32>
    %cst_48 = arith.constant dense<0.000000e+00> : vector<8x128xf32>
    %222 = tpu.matmul %219, %2, %cst_48 {dimension_numbers = #tpu.dot_dimension_numbers<[1], [0], [0], [1], [0, 0, 1, 1], [], []>} : vector<8x32xf32>, vector<32x128xf32>, vector<8x128xf32> -> vector<8x128xf32>
    %223 = arith.addf %221, %222 : vector<8x128xf32>
    %224 = vector.extract_strided_slice %223 {offsets = [0, 0], sizes = [8, 32], strides = [1, 1]} : vector<8x128xf32> to vector<8x32xf32>
    %225 = arith.negf %224 : vector<8x32xf32>
    %226 = math.exp %225 : vector<8x32xf32>
    %cst_49 = arith.constant 1.000000e+00 : f32
    %227 = vector.broadcast %cst_49 : f32 to vector<8x32xf32>
    %228 = arith.addf %227, %226 : vector<8x32xf32>
    %229 = arith.divf %227, %228 : vector<8x32xf32>
    %230 = vector.extract_strided_slice %223 {offsets = [0, 32], sizes = [8, 32], strides = [1, 1]} : vector<8x128xf32> to vector<8x32xf32>
    %231 = arith.negf %230 : vector<8x32xf32>
    %232 = math.exp %231 : vector<8x32xf32>
    %cst_50 = arith.constant 1.000000e+00 : f32
    %233 = vector.broadcast %cst_50 : f32 to vector<8x32xf32>
    %234 = arith.addf %233, %232 : vector<8x32xf32>
    %235 = arith.divf %233, %234 : vector<8x32xf32>
    %236 = vector.extract_strided_slice %223 {offsets = [0, 64], sizes = [8, 32], strides = [1, 1]} : vector<8x128xf32> to vector<8x32xf32>
    %237 = math.tanh %236 : vector<8x32xf32>
    %238 = vector.extract_strided_slice %223 {offsets = [0, 96], sizes = [8, 32], strides = [1, 1]} : vector<8x128xf32> to vector<8x32xf32>
    %239 = arith.negf %238 : vector<8x32xf32>
    %240 = math.exp %239 : vector<8x32xf32>
    %cst_51 = arith.constant 1.000000e+00 : f32
    %241 = vector.broadcast %cst_51 : f32 to vector<8x32xf32>
    %242 = arith.addf %241, %240 : vector<8x32xf32>
    %243 = arith.divf %241, %242 : vector<8x32xf32>
    %244 = arith.mulf %235, %220 : vector<8x32xf32>
    %245 = arith.mulf %229, %237 : vector<8x32xf32>
    %246 = arith.addf %244, %245 : vector<8x32xf32>
    %247 = math.tanh %246 : vector<8x32xf32>
    %248 = arith.mulf %243, %247 : vector<8x32xf32>
    %249 = vector.extract_strided_slice %14 {offsets = [48, 0], sizes = [8, 32], strides = [1, 1]} : vector<64x32xi1> to vector<8x32xi1>
    %250 = arith.select %249, %248, %219 : vector<8x32xi1>, vector<8x32xf32>
    %251 = arith.select %249, %246, %220 : vector<8x32xi1>, vector<8x32xf32>
    %252 = vector.extract_strided_slice %32 {offsets = [56, 0], sizes = [8, 128], strides = [1, 1]} : vector<64x128xf32> to vector<8x128xf32>
    %cst_52 = arith.constant dense<0.000000e+00> : vector<8x128xf32>
    %253 = tpu.matmul %250, %2, %cst_52 {dimension_numbers = #tpu.dot_dimension_numbers<[1], [0], [0], [1], [0, 0, 1, 1], [], []>} : vector<8x32xf32>, vector<32x128xf32>, vector<8x128xf32> -> vector<8x128xf32>
    %254 = arith.addf %252, %253 : vector<8x128xf32>
    %255 = vector.extract_strided_slice %254 {offsets = [0, 0], sizes = [8, 32], strides = [1, 1]} : vector<8x128xf32> to vector<8x32xf32>
    %256 = arith.negf %255 : vector<8x32xf32>
    %257 = math.exp %256 : vector<8x32xf32>
    %cst_53 = arith.constant 1.000000e+00 : f32
    %258 = vector.broadcast %cst_53 : f32 to vector<8x32xf32>
    %259 = arith.addf %258, %257 : vector<8x32xf32>
    %260 = arith.divf %258, %259 : vector<8x32xf32>
    %261 = vector.extract_strided_slice %254 {offsets = [0, 32], sizes = [8, 32], strides = [1, 1]} : vector<8x128xf32> to vector<8x32xf32>
    %262 = arith.negf %261 : vector<8x32xf32>
    %263 = math.exp %262 : vector<8x32xf32>
    %cst_54 = arith.constant 1.000000e+00 : f32
    %264 = vector.broadcast %cst_54 : f32 to vector<8x32xf32>
    %265 = arith.addf %264, %263 : vector<8x32xf32>
    %266 = arith.divf %264, %265 : vector<8x32xf32>
    %267 = vector.extract_strided_slice %254 {offsets = [0, 64], sizes = [8, 32], strides = [1, 1]} : vector<8x128xf32> to vector<8x32xf32>
    %268 = math.tanh %267 : vector<8x32xf32>
    %269 = vector.extract_strided_slice %254 {offsets = [0, 96], sizes = [8, 32], strides = [1, 1]} : vector<8x128xf32> to vector<8x32xf32>
    %270 = arith.negf %269 : vector<8x32xf32>
    %271 = math.exp %270 : vector<8x32xf32>
    %cst_55 = arith.constant 1.000000e+00 : f32
    %272 = vector.broadcast %cst_55 : f32 to vector<8x32xf32>
    %273 = arith.addf %272, %271 : vector<8x32xf32>
    %274 = arith.divf %272, %273 : vector<8x32xf32>
    %275 = arith.mulf %266, %251 : vector<8x32xf32>
    %276 = arith.mulf %260, %268 : vector<8x32xf32>
    %277 = arith.addf %275, %276 : vector<8x32xf32>
    %278 = math.tanh %277 : vector<8x32xf32>
    %279 = arith.mulf %274, %278 : vector<8x32xf32>
    %280 = vector.extract_strided_slice %14 {offsets = [56, 0], sizes = [8, 32], strides = [1, 1]} : vector<64x32xi1> to vector<8x32xi1>
    %281 = arith.select %280, %279, %250 : vector<8x32xi1>, vector<8x32xf32>
    %cst_56 = arith.constant dense<0.000000e+00> : vector<8x32xf32>
    %282 = tpu.matmul %281, %10, %cst_56 {dimension_numbers = #tpu.dot_dimension_numbers<[1], [0], [0], [1], [0, 0, 1, 1], [], []>} : vector<8x32xf32>, vector<32x32xf32>, vector<8x32xf32> -> vector<8x32xf32>
    %283 = vector.broadcast %11 : vector<1x32xf32> to vector<8x32xf32>
    %284 = arith.addf %282, %283 : vector<8x32xf32>
    %285 = math.tanh %284 : vector<8x32xf32>
    %cst_57 = arith.constant dense<0.000000e+00> : vector<8x128xf32>
    %286 = tpu.matmul %285, %3, %cst_57 {dimension_numbers = #tpu.dot_dimension_numbers<[1], [0], [0], [1], [0, 0, 1, 1], [], []>} : vector<8x32xf32>, vector<32x128xf32>, vector<8x128xf32> -> vector<8x128xf32>
    %287 = vector.broadcast %5 : vector<1x128xf32> to vector<8x128xf32>
    %288 = arith.addf %286, %287 : vector<8x128xf32>
    %cst_58 = arith.constant dense<0xFF800000> : vector<8xf32>
    %289 = vector.multi_reduction <maximumf>, %288, %cst_58 [1] : vector<8x128xf32> to vector<8xf32>
    %290 = vector.shape_cast %289 : vector<8xf32> to vector<8x1xf32>
    %291 = vector.broadcast %290 : vector<8x1xf32> to vector<8x128xf32>
    %292 = arith.subf %288, %291 : vector<8x128xf32>
    %293 = math.exp %292 : vector<8x128xf32>
    %cst_59 = arith.constant dense<0.000000e+00> : vector<8xf32>
    %294 = vector.multi_reduction <add>, %293, %cst_59 [1] : vector<8x128xf32> to vector<8xf32>
    %295 = vector.shape_cast %294 : vector<8xf32> to vector<8x1xf32>
    %296 = math.log %295 : vector<8x1xf32>
    %297 = arith.addf %296, %290 : vector<8x1xf32>
    %298 = vector.broadcast %297 : vector<8x1xf32> to vector<8x128xf32>
    %299 = arith.subf %298, %288 : vector<8x128xf32>
    %300 = arith.mulf %6, %299 : vector<8x128xf32>
    %cst_60 = arith.constant dense<0.000000e+00> : vector<8xf32>
    %301 = vector.multi_reduction <add>, %300, %cst_60 [1] : vector<8x128xf32> to vector<8xf32>
    %302 = vector.shape_cast %301 : vector<8xf32> to vector<8x1xf32>
    %cst_61 = arith.constant dense<0.000000e+00> : vector<1xf32>
    %303 = vector.multi_reduction <add>, %302, %cst_61 [0] : vector<8x1xf32> to vector<1xf32>
    %304 = vector.shape_cast %303 : vector<1xf32> to vector<1x1xf32>
    %c0_62 = arith.constant 0 : index
    %c0_63 = arith.constant 0 : index
    %305 = vector.load %arg3[%c0_62, %c0_63] : memref<16x128xf32, #tpu.memory_space<vmem>>, vector<8x128xf32>
    tpu.vector_store %arg3[%c0_62, %c0_63], %288 {strides = array<i32>} : memref<16x128xf32, #tpu.memory_space<vmem>>, vector<8x128xf32>,
    %306 = vector.shape_cast %304 : vector<1x1xf32> to vector<1x1xf32>
    %307 = vector.broadcast %306 : vector<1x1xf32> to vector<8x128xf32>
    %c8 = arith.constant 8 : index
    %c0_64 = arith.constant 0 : index
    %308 = vector.load %arg3[%c8, %c0_64] : memref<16x128xf32, #tpu.memory_space<vmem>>, vector<8x128xf32>
    tpu.vector_store %arg3[%c8, %c0_64], %307 {strides = array<i32>} : memref<16x128xf32, #tpu.memory_space<vmem>>, vector<8x128xf32>,
    return
  }
}

</mosaic_0001>

<llo_original>
// kernel: tpu_custom_call.1
$region0: #{tpu_custom_call.1}
  #allocation0 [shape = 'u32[]', space=smem, size = 0x4, offset = 0x4, fixed_abs, tag = 'smem constant byte address 0x4 - core index']
  #allocation1 [shape = 'u32[144,128]{1,0:T(1,128)}', space=vmem, size = 0x12000, scoped, tag = 'internal scratch']
  %s0 = inlined_call_operand.vmem [shape: f32[32,256], index: 0, kind: input, shape index: {}]
  %s1 = inlined_call_operand.vmem [shape: f32[152,128], index: 1, kind: input, shape index: {}]
  %s2 = inlined_call_operand.vmem [shape: f32[632,32], index: 2, kind: input, shape index: {}]
  %s3 = inlined_call_operand.hbm [shape: f32[16,128], index: 3, kind: output, shape index: {}]
  %s4 = sld [smem:[#allocation0]]
  $region22: #{tpu_custom_call.1} parent=0
    _
  %s6 = ssub.s32 1, %s4
  %s7 = scalar_select 0, %s6, %s4
  $region1: #{tpu_custom_call.1} parent=0
    #allocation2 [shape = 'u8[8192]{0}', space=vmem, size = 0x2000, scoped, tag = 'output window, operand 0, single buffered']
    #allocation3 [shape = 's32[1]{0}', space=sflag, size = 0x4, scoped, tag = 'scoped memory for tpu_custom_call.1']
    %8 = vsyncpa [#allocation3], 0
    // Predicated region
    $region2: #{tpu_custom_call.1} parent=1 // pred_check
      _
    $region3: #{tpu_custom_call.1} parent=1 // pred_check_branch
      %10 = sbr.rel (0) target = $region5
    $region4: #{tpu_custom_call.1} parent=1 // pred_region
      _
    $region5: #{tpu_custom_call.1} parent=1 // pred_fallthru
      _
    // Predicated region
    $region6: #{tpu_custom_call.1} parent=1 // pred_check
      _
    $region7: #{tpu_custom_call.1} parent=1 // pred_check_branch
      %12 = sbr.rel (0) target = $region9
    $region8: #{tpu_custom_call.1} parent=1 // pred_region
      _
    $region9: #{tpu_custom_call.1} parent=1 // pred_fallthru
      _
    // Predicated region
    $region10: #{tpu_custom_call.1} parent=1 // pred_check
      _
    $region11: #{tpu_custom_call.1} parent=1 // pred_check_branch
      %14 = sbr.rel (0) target = $region13
    $region12: #{tpu_custom_call.1} parent=1 // pred_region
      _
    $region13: #{tpu_custom_call.1} parent=1 // pred_fallthru
      _
    %v15 = vld [vmem:[%s1] sm:$0xff]
    %v16 = vld [vmem:[%s1 + $0x8] sm:$0xff]
    %v17 = vld [vmem:[%s1 + $0x10] sm:$0xff]
    %v18 = vld [vmem:[%s1 + $0x18] sm:$0xff]
    %v19 = vld [vmem:[%s1 + $0x20] sm:$0xff]
    %v20 = vld [vmem:[%s1 + $0x28] sm:$0xff]
    %v21 = vld [vmem:[%s1 + $0x30] sm:$0xff]
    %v22 = vld [vmem:[%s1 + $0x38] sm:$0xff]
    %v23 = vld [vmem:[%s1 + $0x40] sm:$0xff]
    %v24 = vld [vmem:[%s1 + $0x48] sm:$0xff]
    %v25 = vld [vmem:[%s1 + $0x50] sm:$0xff]
    %v26 = vld [vmem:[%s1 + $0x58] sm:$0xff]
    %v27 = vld [vmem:[%s1 + $0x60] sm:$0xff]
    %v28 = vld [vmem:[%s1 + $0x68] sm:$0xff]
    %v29 = vld [vmem:[%s1 + $0x70] sm:$0xff]
    %v30 = vld [vmem:[%s1 + $0x78] sm:$0xff]
    %v31 = vld [vmem:[%s1 + $0x80] sm:$0x1]
    %v32 = vld [vmem:[%s1 + $0x88] sm:$0x1]
    %v33 = vld [vmem:[%s1 + $0x90] sm:$0xff]
    %v34 = vld [vmem:[%s2] sm:$0xff]
    %v35 = vld [vmem:[%s2 + $0x8] sm:$0xff]
    %v36 = vld [vmem:[%s2 + $0x10] sm:$0xff]
    %v37 = vld [vmem:[%s2 + $0x18] sm:$0xff]
    %v38 = vld [vmem:[%s2 + $0x20] sm:$0xff]
    %v39 = vld [vmem:[%s2 + $0x28] sm:$0xff]
    %v40 = vld [vmem:[%s2 + $0x30] sm:$0xff]
    %v41 = vld [vmem:[%s2 + $0x38] sm:$0xff]
    %v42 = vld [vmem:[%s2 + $0x40] sm:$0xff]
    %v43 = vld [vmem:[%s2 + $0x48] sm:$0xff]
    %v44 = vld [vmem:[%s2 + $0x50] sm:$0xff]
    %v45 = vld [vmem:[%s2 + $0x58] sm:$0xff]
    %v46 = vld [vmem:[%s2 + $0x60] sm:$0xff]
    %v47 = vld [vmem:[%s2 + $0x68] sm:$0xff]
    %v48 = vld [vmem:[%s2 + $0x70] sm:$0xff]
    %v49 = vld [vmem:[%s2 + $0x78] sm:$0xff]
    %v50 = vld [vmem:[%s2 + $0x80] sm:$0xff]
    %v51 = vld [vmem:[%s2 + $0x88] sm:$0xff]
    %v52 = vld [vmem:[%s2 + $0x90] sm:$0xff]
    %v53 = vld [vmem:[%s2 + $0x98] sm:$0xff]
    %v54 = vld [vmem:[%s2 + $0xa0] sm:$0xff]
    %v55 = vld [vmem:[%s2 + $0xa8] sm:$0xff]
    %v56 = vld [vmem:[%s2 + $0xb0] sm:$0xff]
    %v57 = vld [vmem:[%s2 + $0xb8] sm:$0xff]
    %v58 = vld [vmem:[%s2 + $0xc0] sm:$0xff]
    %v59 = vld [vmem:[%s2 + $0xc8] sm:$0xff]
    %v60 = vld [vmem:[%s2 + $0xd0] sm:$0xff]
    %v61 = vld [vmem:[%s2 + $0xd8] sm:$0xff]
    %v62 = vld [vmem:[%s2 + $0xe0] sm:$0xff]
    %v63 = vld [vmem:[%s2 + $0xe8] sm:$0xff]
    %v64 = vld [vmem:[%s2 + $0xf0] sm:$0xff]
    %v65 = vld [vmem:[%s2 + $0xf8] sm:$0xff]
    %v66 = vld [vmem:[%s2 + $0x100] sm:$0x1]
    %v67 = vld [vmem:[%s2 + $0x108] sm:$0x1]
    %v68 = vld [vmem:[%s2 + $0x110] sm:$0xff]
    %v69 = vld [vmem:[%s2 + $0x118] sm:$0xff]
    %v70 = vld [vmem:[%s2 + $0x120] sm:$0xff]
    %v71 = vld [vmem:[%s2 + $0x128] sm:$0xff]
    %v72 = vld [vmem:[%s2 + $0x130] sm:$0x1]
    %v73 = vld [vmem:[%s2 + $0x138] sm:$0xff]
    %v74 = vld [vmem:[%s2 + $0x140] sm:$0xff]
    %v75 = vld [vmem:[%s2 + $0x148] sm:$0xff]
    %v76 = vld [vmem:[%s2 + $0x150] sm:$0xff]
    %v77 = vld [vmem:[%s2 + $0x158] sm:$0xff]
    %v78 = vld [vmem:[%s2 + $0x160] sm:$0xff]
    %v79 = vld [vmem:[%s2 + $0x168] sm:$0xff]
    %v80 = vld [vmem:[%s2 + $0x170] sm:$0xff]
    %vm81 = vcmp.gt.f32.partialorder %v73, 0.5
    %vm82 = vcmp.gt.f32.partialorder %v74, 0.5
    %vm83 = vcmp.gt.f32.partialorder %v75, 0.5
    %vm84 = vcmp.gt.f32.partialorder %v76, 0.5
    %vm85 = vcmp.gt.f32.partialorder %v77, 0.5
    %vm86 = vcmp.gt.f32.partialorder %v78, 0.5
    %vm87 = vcmp.gt.f32.partialorder %v79, 0.5
    %vm88 = vcmp.gt.f32.partialorder %v80, 0.5
    %v89 = vld [vmem:[%s2 + $0x178] sm:$0xff]
    %v90 = vld [vmem:[%s2 + $0x180] sm:$0xff]
    %v91 = vld [vmem:[%s2 + $0x188] sm:$0xff]
    %v92 = vld [vmem:[%s2 + $0x190] sm:$0xff]
    %v93 = vld [vmem:[%s2 + $0x198] sm:$0xff]
    %v94 = vld [vmem:[%s2 + $0x1a0] sm:$0xff]
    %v95 = vld [vmem:[%s2 + $0x1a8] sm:$0xff]
    %v96 = vld [vmem:[%s2 + $0x1b0] sm:$0xff]
    %v97 = vld [vmem:[%s2 + $0x1b8] sm:$0xff]
    %v98 = vld [vmem:[%s2 + $0x1c0] sm:$0xff]
    %v99 = vld [vmem:[%s2 + $0x1c8] sm:$0xff]
    %v100 = vld [vmem:[%s2 + $0x1d0] sm:$0xff]
    %v101 = vld [vmem:[%s2 + $0x1d8] sm:$0xff]
    %v102 = vld [vmem:[%s2 + $0x1e0] sm:$0xff]
    %v103 = vld [vmem:[%s2 + $0x1e8] sm:$0xff]
    %v104 = vld [vmem:[%s2 + $0x1f0] sm:$0xff]
    %v105 = vld [vmem:[%s2 + $0x1f8] sm:$0xff]
    %v106 = vld [vmem:[%s2 + $0x200] sm:$0xff]
    %v107 = vld [vmem:[%s2 + $0x208] sm:$0xff]
    %v108 = vld [vmem:[%s2 + $0x210] sm:$0xff]
    %v109 = vld [vmem:[%s2 + $0x218] sm:$0xff]
    %v110 = vld [vmem:[%s2 + $0x220] sm:$0xff]
    %v111 = vld [vmem:[%s2 + $0x228] sm:$0xff]
    %v112 = vld [vmem:[%s2 + $0x230] sm:$0xff]
    %v113 = vld [vmem:[%s2 + $0x238] sm:$0xff]
    %v114 = vld [vmem:[%s2 + $0x240] sm:$0xff]
    %v115 = vld [vmem:[%s2 + $0x248] sm:$0xff]
    %v116 = vld [vmem:[%s2 + $0x250] sm:$0xff]
    %v117 = vld [vmem:[%s2 + $0x258] sm:$0xff]
    %v118 = vld [vmem:[%s2 + $0x260] sm:$0xff]
    %v119 = vld [vmem:[%s2 + $0x268] sm:$0xff]
    %v120 = vld [vmem:[%s2 + $0x270] sm:$0xff]
    %v121 = vld [vmem:[%s0] sm:$0xff]
    %v122 = vld [vmem:[%s0 + $0x8] sm:$0xff]
    %v123 = vld [vmem:[%s0 + $0x10] sm:$0xff]
    %v124 = vld [vmem:[%s0 + $0x18] sm:$0xff]
    %v125 = vld [vmem:[%s0 + $0x20] sm:$0xff]
    %v126 = vld [vmem:[%s0 + $0x28] sm:$0xff]
    %v127 = vld [vmem:[%s0 + $0x30] sm:$0xff]
    %v128 = vld [vmem:[%s0 + $0x38] sm:$0xff]
    %v129 = vlaneseq
    %v130 = vshrl.u32 %v129, 7
    %v131 = vsub.s32 0, %v130
    %v132 = vrot.slane %v66, %v131
    %133 = vmatprep.subr.mxu0 0.0
    %134 = vmatpush1.msra.mxu0 %v49
    %135 = vmatprep.subr.mxu0 0.0
    %136 = vmatpush1.msra.mxu0 %v48
    %137 = vmatprep.subr.mxu0 0.0
    %138 = vmatpush1.msra.mxu0 %v47
    %139 = vmatprep.subr.mxu0 0.0
    %140 = vmatpush1.msra.mxu0 %v46
    %141 = vmatprep.subr.mxu0 0.0
    %142 = vmatpush1.msra.mxu0 %v45
    %143 = vmatprep.subr.mxu0 0.0
    %144 = vmatpush1.msra.mxu0 %v44
    %145 = vmatprep.subr.mxu0 0.0
    %146 = vmatpush1.msra.mxu0 %v43
    %147 = vmatprep.subr.mxu0 0.0
    %148 = vmatpush1.msra.mxu0 %v42
    %149 = vmatprep.subr.mxu0 0.0
    %150 = vmatpush1.msra.mxu0 %v41
    %151 = vmatprep.subr.mxu0 0.0
    %152 = vmatpush1.msra.mxu0 %v40
    %153 = vmatprep.subr.mxu0 0.0
    %154 = vmatpush1.msra.mxu0 %v39
    %155 = vmatprep.subr.mxu0 0.0
    %156 = vmatpush1.msra.mxu0 %v38
    %157 = vmatprep.subr.mxu0 0.0
    %158 = vmatpush1.msra.mxu0 %v37
    %159 = vmatprep.subr.mxu0 0.0
    %160 = vmatpush1.msra.mxu0 %v36
    %161 = vmatprep.subr.mxu0 0.0
    %162 = vmatpush1.msra.mxu0 %v35
    %163 = vmatprep.subr.mxu0 0.0
    %164 = vmatpush1.msra.mxu0 %v34
    %165 = vmatprep.subr.mxu0 0.0
    %166 = vmatpush2.msra.mxu0 %v65
    %167 = vmatprep.subr.mxu0 0.0
    %168 = vmatpush2.msra.mxu0 %v64
    %169 = vmatprep.subr.mxu0 0.0
    %170 = vmatpush2.msra.mxu0 %v63
    %171 = vmatprep.subr.mxu0 0.0
    %172 = vmatpush2.msra.mxu0 %v62
    %173 = vmatprep.subr.mxu0 0.0
    %174 = vmatpush2.msra.mxu0 %v61
    %175 = vmatprep.subr.mxu0 0.0
    %176 = vmatpush2.msra.mxu0 %v60
    %177 = vmatprep.subr.mxu0 0.0
    %178 = vmatpush2.msra.mxu0 %v59
    %179 = vmatprep.subr.mxu0 0.0
    %180 = vmatpush2.msra.mxu0 %v58
    %181 = vmatprep.subr.mxu0 0.0
    %182 = vmatpush2.msra.mxu0 %v57
    %183 = vmatprep.subr.mxu0 0.0
    %184 = vmatpush2.msra.mxu0 %v56
    %185 = vmatprep.subr.mxu0 0.0
    %186 = vmatpush2.msra.mxu0 %v55
    %187 = vmatprep.subr.mxu0 0.0
    %188 = vmatpush2.msra.mxu0 %v54
    %189 = vmatprep.subr.mxu0 0.0
    %190 = vmatpush2.msra.mxu0 %v53
    %191 = vmatprep.subr.mxu0 0.0
    %192 = vmatpush2.msra.mxu0 %v52
    %193 = vmatprep.subr.mxu0 0.0
    %194 = vmatpush2.msra.mxu0 %v51
    %195 = vmatprep.subr.mxu0 0.0
    %196 = vmatpush2.msra.mxu0 %v50
    %197 = vmatprep.mubr.f32.mxu0 %v122
    %198 = vmatmul.mubr.f32.gmra.mxu0 %v121
    %v199 = vpop.f32.mrf.mxu0
    %v200 = vadd.f32 %v132, %v199
    %v201 = vpop.f32.mrf.mxu0
    %202 = vmatprep.mubr.f32.mxu0 %v124
    %203 = vmatmul.mubr.f32.gmra.mxu0 %v123
    %v204 = vpop.f32.mrf.mxu0
    %v205 = vadd.f32 %v132, %v204
    %v206 = vpop.f32.mrf.mxu0
    %207 = vmatprep.mubr.f32.mxu0 %v126
    %208 = vmatmul.mubr.f32.gmra.mxu0 %v125
    %v209 = vpop.f32.mrf.mxu0
    %v210 = vadd.f32 %v132, %v209
    %v211 = vpop.f32.mrf.mxu0
    %212 = vmatprep.mubr.f32.mxu0 %v128
    %213 = vmatmul.mubr.f32.gmra.mxu0 %v127
    %v214 = vpop.f32.mrf.mxu0
    %v215 = vadd.f32 %v132, %v214
    %v216 = vpop.f32.mrf.mxu0
    %217 = vdwg.mxu0
    %v218 = vtanh.pop %v200
    %v219 = vtanh.pop %v205
    %v220 = vtanh.pop %v210
    %v221 = vtanh.pop %v215
    %v222 = vlaneseq
    %v223 = vshrl.u32 %v222, 7
    %v224 = vsub.s32 0, %v223
    %v225 = vrot.slane %v67, %v224
    %v226 = vmul.f32 %v105, %v225
    %v227 = vmul.f32 %v106, %v225
    %v228 = vmul.f32 %v107, %v225
    %v229 = vmul.f32 %v108, %v225
    %v230 = vmul.f32 %v109, %v225
    %v231 = vmul.f32 %v110, %v225
    %v232 = vmul.f32 %v111, %v225
    %v233 = vmul.f32 %v112, %v225
    %v234 = vmul.f32 %v113, %v225
    %v235 = vmul.f32 %v114, %v225
    %v236 = vmul.f32 %v115, %v225
    %v237 = vmul.f32 %v116, %v225
    %v238 = vmul.f32 %v117, %v225
    %v239 = vmul.f32 %v118, %v225
    %v240 = vmul.f32 %v119, %v225
    %v241 = vmul.f32 %v120, %v225
    %vm242 = vcmask 261120
    %v244 = vsel %vm242, %v89, 0
    %v247 = vsel %vm242, %v90, 0
    %v250 = vsel %vm242, %v91, 0
    %v253 = vsel %vm242, %v92, 0
    %v256 = vsel %vm242, %v93, 0
    %v259 = vsel %vm242, %v94, 0
    %v262 = vsel %vm242, %v95, 0
    %v265 = vsel %vm242, %v96, 0
    %v268 = vsel %vm242, %v97, 0
    %v271 = vsel %vm242, %v98, 0
    %v274 = vsel %vm242, %v99, 0
    %v277 = vsel %vm242, %v100, 0
    %v280 = vsel %vm242, %v101, 0
    %v283 = vsel %vm242, %v102, 0
    %v286 = vsel %vm242, %v103, 0
    %v289 = vsel %vm242, %v104, 0
    %291 = vmatprep.subr.mxu0 0.0
    %292 = vmatpush1.msra.mxu0 0.0
    %293 = vmatprep.subr.mxu0 0.0
    %294 = vmatpush1.msra.mxu0 0.0
    %295 = vmatprep.subr.mxu0 0.0
    %296 = vmatpush1.msra.mxu0 0.0
    %297 = vmatprep.subr.mxu0 0.0
    %298 = vmatpush1.msra.mxu0 0.0
    %299 = vmatprep.subr.mxu0 0.0
    %300 = vmatpush1.msra.mxu0 0.0
    %301 = vmatprep.subr.mxu0 0.0
    %302 = vmatpush1.msra.mxu0 0.0
    %303 = vmatprep.subr.mxu0 0.0
    %304 = vmatpush1.msra.mxu0 0.0
    %305 = vmatprep.subr.mxu0 0.0
    %306 = vmatpush1.msra.mxu0 0.0
    %307 = vmatprep.subr.mxu0 0.0
    %308 = vmatpush1.msra.mxu0 0.0
    %309 = vmatprep.subr.mxu0 0.0
    %310 = vmatpush1.msra.mxu0 0.0
    %311 = vmatprep.subr.mxu0 0.0
    %312 = vmatpush1.msra.mxu0 0.0
    %313 = vmatprep.subr.mxu0 0.0
    %314 = vmatpush1.msra.mxu0 0.0
    %315 = vmatprep.subr.mxu0 0.0
    %316 = vmatpush1.msra.mxu0 %v221
    %317 = vmatprep.subr.mxu0 0.0
    %318 = vmatpush1.msra.mxu0 %v220
    %319 = vmatprep.subr.mxu0 0.0
    %320 = vmatpush1.msra.mxu0 %v219
    %321 = vmatprep.subr.mxu0 0.0
    %322 = vmatpush1.msra.mxu0 %v218
    %323 = vmatprep.subr.mxu0 0.0
    %324 = vmatpush2.msra.mxu0 0.0
    %325 = vmatprep.subr.mxu0 0.0
    %326 = vmatpush2.msra.mxu0 0.0
    %327 = vmatprep.subr.mxu0 0.0
    %328 = vmatpush2.msra.mxu0 0.0
    %329 = vmatprep.subr.mxu0 0.0
    %330 = vmatpush2.msra.mxu0 0.0
    %331 = vmatprep.subr.mxu0 0.0
    %332 = vmatpush2.msra.mxu0 0.0
    %333 = vmatprep.subr.mxu0 0.0
    %334 = vmatpush2.msra.mxu0 0.0
    %335 = vmatprep.subr.mxu0 0.0
    %336 = vmatpush2.msra.mxu0 0.0
    %337 = vmatprep.subr.mxu0 0.0
    %338 = vmatpush2.msra.mxu0 0.0
    %339 = vmatprep.subr.mxu0 0.0
    %340 = vmatpush2.msra.mxu0 0.0
    %341 = vmatprep.subr.mxu0 0.0
    %342 = vmatpush2.msra.mxu0 0.0
    %343 = vmatprep.subr.mxu0 0.0
    %344 = vmatpush2.msra.mxu0 0.0
    %345 = vmatprep.subr.mxu0 0.0
    %346 = vmatpush2.msra.mxu0 0.0
    %347 = vmatprep.subr.mxu0 0.0
    %348 = vmatpush2.msra.mxu0 0.0
    %349 = vmatprep.subr.mxu0 0.0
    %350 = vmatpush2.msra.mxu0 0.0
    %351 = vmatprep.subr.mxu0 0.0
    %352 = vmatpush2.msra.mxu0 0.0
    %353 = vmatprep.subr.mxu0 0.0
    %354 = vmatpush2.msra.mxu0 0.0
    %355 = vmatprep.mubr.f32.mxu0 0.0
    %356 = vmatmul.mubr.f32.gmra.mxu0 %v244
    %v357 = vpop.f32.mrf.mxu0
    %v358 = vadd.f32 %v226, %v357
    %v359 = vpop.f32.mrf.mxu0
    %360 = vmatprep.mubr.f32.mxu0 0.0
    %361 = vmatmul.mubr.f32.gmra.mxu0 %v247
    %v362 = vpop.f32.mrf.mxu0
    %v363 = vadd.f32 %v227, %v362
    %v364 = vpop.f32.mrf.mxu0
    %365 = vmatprep.mubr.f32.mxu0 0.0
    %366 = vmatmul.mubr.f32.gmra.mxu0 %v250
    %v367 = vpop.f32.mrf.mxu0
    %v368 = vadd.f32 %v228, %v367
    %v369 = vpop.f32.mrf.mxu0
    %370 = vmatprep.mubr.f32.mxu0 0.0
    %371 = vmatmul.mubr.f32.gmra.mxu0 %v253
    %v372 = vpop.f32.mrf.mxu0
    %v373 = vadd.f32 %v229, %v372
    %v374 = vpop.f32.mrf.mxu0
    %375 = vmatprep.mubr.f32.mxu0 0.0
    %376 = vmatmul.mubr.f32.gmra.mxu0 %v256
    %v377 = vpop.f32.mrf.mxu0
    %v378 = vadd.f32 %v230, %v377
    %v379 = vpop.f32.mrf.mxu0
    %380 = vmatprep.mubr.f32.mxu0 0.0
    %381 = vmatmul.mubr.f32.gmra.mxu0 %v259
    %v382 = vpop.f32.mrf.mxu0
    %v383 = vadd.f32 %v231, %v382
    %v384 = vpop.f32.mrf.mxu0
    %385 = vmatprep.mubr.f32.mxu0 0.0
    %386 = vmatmul.mubr.f32.gmra.mxu0 %v262
    %v387 = vpop.f32.mrf.mxu0
    %v388 = vadd.f32 %v232, %v387
    %v389 = vpop.f32.mrf.mxu0
    %390 = vmatprep.mubr.f32.mxu0 0.0
    %391 = vmatmul.mubr.f32.gmra.mxu0 %v265
    %v392 = vpop.f32.mrf.mxu0
    %v393 = vadd.f32 %v233, %v392
    %v394 = vpop.f32.mrf.mxu0
    %395 = vmatprep.mubr.f32.mxu0 0.0
    %396 = vmatmul.mubr.f32.gmra.mxu0 %v268
    %v397 = vpop.f32.mrf.mxu0
    %v398 = vadd.f32 %v234, %v397
    %v399 = vpop.f32.mrf.mxu0
    %400 = vmatprep.mubr.f32.mxu0 0.0
    %401 = vmatmul.mubr.f32.gmra.mxu0 %v271
    %v402 = vpop.f32.mrf.mxu0
    %v403 = vadd.f32 %v235, %v402
    %v404 = vpop.f32.mrf.mxu0
    %405 = vmatprep.mubr.f32.mxu0 0.0
    %406 = vmatmul.mubr.f32.gmra.mxu0 %v274
    %v407 = vpop.f32.mrf.mxu0
    %v408 = vadd.f32 %v236, %v407
    %v409 = vpop.f32.mrf.mxu0
    %410 = vmatprep.mubr.f32.mxu0 0.0
    %411 = vmatmul.mubr.f32.gmra.mxu0 %v277
    %v412 = vpop.f32.mrf.mxu0
    %v413 = vadd.f32 %v237, %v412
    %v414 = vpop.f32.mrf.mxu0
    %415 = vmatprep.mubr.f32.mxu0 0.0
    %416 = vmatmul.mubr.f32.gmra.mxu0 %v280
    %v417 = vpop.f32.mrf.mxu0
    %v418 = vadd.f32 %v238, %v417
    %v419 = vpop.f32.mrf.mxu0
    %420 = vmatprep.mubr.f32.mxu0 0.0
    %421 = vmatmul.mubr.f32.gmra.mxu0 %v283
    %v422 = vpop.f32.mrf.mxu0
    %v423 = vadd.f32 %v239, %v422
    %v424 = vpop.f32.mrf.mxu0
    %425 = vmatprep.mubr.f32.mxu0 0.0
    %426 = vmatmul.mubr.f32.gmra.mxu0 %v286
    %v427 = vpop.f32.mrf.mxu0
    %v428 = vadd.f32 %v240, %v427
    %v429 = vpop.f32.mrf.mxu0
    %430 = vmatprep.mubr.f32.mxu0 0.0
    %431 = vmatmul.mubr.f32.gmra.mxu0 %v289
    %v432 = vpop.f32.mrf.mxu0
    %v433 = vadd.f32 %v241, %v432
    %v434 = vpop.f32.mrf.mxu0
    %435 = vdwg.mxu0
    %v437 = vsel %vm242, %v398, 0
    %v440 = vsel %vm242, %v403, 0
    %v443 = vsel %vm242, %v408, 0
    %v446 = vsel %vm242, %v413, 0
    %v449 = vsel %vm242, %v418, 0
    %v452 = vsel %vm242, %v423, 0
    %v455 = vsel %vm242, %v428, 0
    %v458 = vsel %vm242, %v433, 0
    %460 = vmatprep.subr.mxu0 0.0
    %461 = vmatpush1.msra.mxu0 0.0
    %462 = vmatprep.subr.mxu0 0.0
    %463 = vmatpush1.msra.mxu0 0.0
    %464 = vmatprep.subr.mxu0 0.0
    %465 = vmatpush1.msra.mxu0 0.0
    %466 = vmatprep.subr.mxu0 0.0
    %467 = vmatpush1.msra.mxu0 0.0
    %468 = vmatprep.subr.mxu0 0.0
    %469 = vmatpush1.msra.mxu0 0.0
    %470 = vmatprep.subr.mxu0 0.0
    %471 = vmatpush1.msra.mxu0 0.0
    %472 = vmatprep.subr.mxu0 0.0
    %473 = vmatpush1.msra.mxu0 0.0
    %474 = vmatprep.subr.mxu0 0.0
    %475 = vmatpush1.msra.mxu0 0.0
    %476 = vmatprep.subr.mxu0 0.0
    %477 = vmatpush1.msra.mxu0 0.0
    %478 = vmatprep.subr.mxu0 0.0
    %479 = vmatpush1.msra.mxu0 0.0
    %480 = vmatprep.subr.mxu0 0.0
    %481 = vmatpush1.msra.mxu0 0.0
    %482 = vmatprep.subr.mxu0 0.0
    %483 = vmatpush1.msra.mxu0 0.0
    %484 = vmatprep.subr.mxu0 0.0
    %485 = vmatpush1.msra.mxu0 %v22
    %486 = vmatprep.subr.mxu0 0.0
    %487 = vmatpush1.msra.mxu0 %v21
    %488 = vmatprep.subr.mxu0 0.0
    %489 = vmatpush1.msra.mxu0 %v20
    %490 = vmatprep.subr.mxu0 0.0
    %491 = vmatpush1.msra.mxu0 %v19
    %492 = vmatprep.subr.mxu0 0.0
    %493 = vmatpush2.msra.mxu0 0.0
    %494 = vmatprep.subr.mxu0 0.0
    %495 = vmatpush2.msra.mxu0 0.0
    %496 = vmatprep.subr.mxu0 0.0
    %497 = vmatpush2.msra.mxu0 0.0
    %498 = vmatprep.subr.mxu0 0.0
    %499 = vmatpush2.msra.mxu0 0.0
    %500 = vmatprep.subr.mxu0 0.0
    %501 = vmatpush2.msra.mxu0 0.0
    %502 = vmatprep.subr.mxu0 0.0
    %503 = vmatpush2.msra.mxu0 0.0
    %504 = vmatprep.subr.mxu0 0.0
    %505 = vmatpush2.msra.mxu0 0.0
    %506 = vmatprep.subr.mxu0 0.0
    %507 = vmatpush2.msra.mxu0 0.0
    %508 = vmatprep.subr.mxu0 0.0
    %509 = vmatpush2.msra.mxu0 0.0
    %510 = vmatprep.subr.mxu0 0.0
    %511 = vmatpush2.msra.mxu0 0.0
    %512 = vmatprep.subr.mxu0 0.0
    %513 = vmatpush2.msra.mxu0 0.0
    %514 = vmatprep.subr.mxu0 0.0
    %515 = vmatpush2.msra.mxu0 0.0
    %516 = vmatprep.subr.mxu0 0.0
    %517 = vmatpush2.msra.mxu0 0.0
    %518 = vmatprep.subr.mxu0 0.0
    %519 = vmatpush2.msra.mxu0 0.0
    %520 = vmatprep.subr.mxu0 0.0
    %521 = vmatpush2.msra.mxu0 0.0
    %522 = vmatprep.subr.mxu0 0.0
    %523 = vmatpush2.msra.mxu0 0.0
    %524 = vmatprep.mubr.f32.mxu0 0.0
    %525 = vmatmul.mubr.f32.gmra.mxu0 %v437
    %v526 = vpop.f32.mrf.mxu0
    %v527 = vadd.f32 0.0, %v526
    %v528 = vpop.f32.mrf.mxu0
    %529 = vmatprep.mubr.f32.mxu0 0.0
    %530 = vmatmul.mubr.f32.gmra.mxu0 %v440
    %v531 = vpop.f32.mrf.mxu0
    %v532 = vadd.f32 0.0, %v531
    %v533 = vpop.f32.mrf.mxu0
    %534 = vmatprep.mubr.f32.mxu0 0.0
    %535 = vmatmul.mubr.f32.gmra.mxu0 %v443
    %v536 = vpop.f32.mrf.mxu0
    %v537 = vadd.f32 0.0, %v536
    %v538 = vpop.f32.mrf.mxu0
    %539 = vmatprep.mubr.f32.mxu0 0.0
    %540 = vmatmul.mubr.f32.gmra.mxu0 %v446
    %v541 = vpop.f32.mrf.mxu0
    %v542 = vadd.f32 0.0, %v541
    %v543 = vpop.f32.mrf.mxu0
    %544 = vmatprep.mubr.f32.mxu0 0.0
    %545 = vmatmul.mubr.f32.gmra.mxu0 %v449
    %v546 = vpop.f32.mrf.mxu0
    %v547 = vadd.f32 0.0, %v546
    %v548 = vpop.f32.mrf.mxu0
    %549 = vmatprep.mubr.f32.mxu0 0.0
    %550 = vmatmul.mubr.f32.gmra.mxu0 %v452
    %v551 = vpop.f32.mrf.mxu0
    %v552 = vadd.f32 0.0, %v551
    %v553 = vpop.f32.mrf.mxu0
    %554 = vmatprep.mubr.f32.mxu0 0.0
    %555 = vmatmul.mubr.f32.gmra.mxu0 %v455
    %v556 = vpop.f32.mrf.mxu0
    %v557 = vadd.f32 0.0, %v556
    %v558 = vpop.f32.mrf.mxu0
    %559 = vmatprep.mubr.f32.mxu0 0.0
    %560 = vmatmul.mubr.f32.gmra.mxu0 %v458
    %v561 = vpop.f32.mrf.mxu0
    %v562 = vadd.f32 0.0, %v561
    %v563 = vpop.f32.mrf.mxu0
    %564 = vdwg.mxu0
    %v566 = vsel %vm242, %v358, 0
    %v569 = vsel %vm242, %v363, 0
    %v572 = vsel %vm242, %v368, 0
    %v575 = vsel %vm242, %v373, 0
    %v578 = vsel %vm242, %v378, 0
    %v581 = vsel %vm242, %v383, 0
    %v584 = vsel %vm242, %v388, 0
    %v587 = vsel %vm242, %v393, 0
    %589 = vmatprep.subr.mxu0 0.0
    %590 = vmatpush1.msra.mxu0 0.0
    %591 = vmatprep.subr.mxu0 0.0
    %592 = vmatpush1.msra.mxu0 0.0
    %593 = vmatprep.subr.mxu0 0.0
    %594 = vmatpush1.msra.mxu0 0.0
    %595 = vmatprep.subr.mxu0 0.0
    %596 = vmatpush1.msra.mxu0 0.0
    %597 = vmatprep.subr.mxu0 0.0
    %598 = vmatpush1.msra.mxu0 0.0
    %599 = vmatprep.subr.mxu0 0.0
    %600 = vmatpush1.msra.mxu0 0.0
    %601 = vmatprep.subr.mxu0 0.0
    %602 = vmatpush1.msra.mxu0 0.0
    %603 = vmatprep.subr.mxu0 0.0
    %604 = vmatpush1.msra.mxu0 0.0
    %605 = vmatprep.subr.mxu0 0.0
    %606 = vmatpush1.msra.mxu0 0.0
    %607 = vmatprep.subr.mxu0 0.0
    %608 = vmatpush1.msra.mxu0 0.0
    %609 = vmatprep.subr.mxu0 0.0
    %610 = vmatpush1.msra.mxu0 0.0
    %611 = vmatprep.subr.mxu0 0.0
    %612 = vmatpush1.msra.mxu0 0.0
    %613 = vmatprep.subr.mxu0 0.0
    %614 = vmatpush1.msra.mxu0 %v18
    %615 = vmatprep.subr.mxu0 0.0
    %616 = vmatpush1.msra.mxu0 %v17
    %617 = vmatprep.subr.mxu0 0.0
    %618 = vmatpush1.msra.mxu0 %v16
    %619 = vmatprep.subr.mxu0 0.0
    %620 = vmatpush1.msra.mxu0 %v15
    %621 = vmatprep.subr.mxu0 0.0
    %622 = vmatpush2.msra.mxu0 0.0
    %623 = vmatprep.subr.mxu0 0.0
    %624 = vmatpush2.msra.mxu0 0.0
    %625 = vmatprep.subr.mxu0 0.0
    %626 = vmatpush2.msra.mxu0 0.0
    %627 = vmatprep.subr.mxu0 0.0
    %628 = vmatpush2.msra.mxu0 0.0
    %629 = vmatprep.subr.mxu0 0.0
    %630 = vmatpush2.msra.mxu0 0.0
    %631 = vmatprep.subr.mxu0 0.0
    %632 = vmatpush2.msra.mxu0 0.0
    %633 = vmatprep.subr.mxu0 0.0
    %634 = vmatpush2.msra.mxu0 0.0
    %635 = vmatprep.subr.mxu0 0.0
    %636 = vmatpush2.msra.mxu0 0.0
    %637 = vmatprep.subr.mxu0 0.0
    %638 = vmatpush2.msra.mxu0 0.0
    %639 = vmatprep.subr.mxu0 0.0
    %640 = vmatpush2.msra.mxu0 0.0
    %641 = vmatprep.subr.mxu0 0.0
    %642 = vmatpush2.msra.mxu0 0.0
    %643 = vmatprep.subr.mxu0 0.0
    %644 = vmatpush2.msra.mxu0 0.0
    %645 = vmatprep.subr.mxu0 0.0
    %646 = vmatpush2.msra.mxu0 0.0
    %647 = vmatprep.subr.mxu0 0.0
    %648 = vmatpush2.msra.mxu0 0.0
    %649 = vmatprep.subr.mxu0 0.0
    %650 = vmatpush2.msra.mxu0 0.0
    %651 = vmatprep.subr.mxu0 0.0
    %652 = vmatpush2.msra.mxu0 0.0
    %653 = vmatprep.mubr.f32.mxu0 0.0
    %654 = vmatmul.mubr.f32.gmra.mxu0 %v566
    %v655 = vpop.f32.mrf.mxu0
    %v656 = vadd.f32 %v527, %v655
    %v657 = vpop.f32.mrf.mxu0
    %658 = vmatprep.mubr.f32.mxu0 0.0
    %659 = vmatmul.mubr.f32.gmra.mxu0 %v569
    %v660 = vpop.f32.mrf.mxu0
    %v661 = vadd.f32 %v532, %v660
    %v662 = vpop.f32.mrf.mxu0
    %663 = vmatprep.mubr.f32.mxu0 0.0
    %664 = vmatmul.mubr.f32.gmra.mxu0 %v572
    %v665 = vpop.f32.mrf.mxu0
    %v666 = vadd.f32 %v537, %v665
    %v667 = vpop.f32.mrf.mxu0
    %668 = vmatprep.mubr.f32.mxu0 0.0
    %669 = vmatmul.mubr.f32.gmra.mxu0 %v575
    %v670 = vpop.f32.mrf.mxu0
    %v671 = vadd.f32 %v542, %v670
    %v672 = vpop.f32.mrf.mxu0
    %673 = vmatprep.mubr.f32.mxu0 0.0
    %674 = vmatmul.mubr.f32.gmra.mxu0 %v578
    %v675 = vpop.f32.mrf.mxu0
    %v676 = vadd.f32 %v547, %v675
    %v677 = vpop.f32.mrf.mxu0
    %678 = vmatprep.mubr.f32.mxu0 0.0
    %679 = vmatmul.mubr.f32.gmra.mxu0 %v581
    %v680 = vpop.f32.mrf.mxu0
    %v681 = vadd.f32 %v552, %v680
    %v682 = vpop.f32.mrf.mxu0
    %683 = vmatprep.mubr.f32.mxu0 0.0
    %684 = vmatmul.mubr.f32.gmra.mxu0 %v584
    %v685 = vpop.f32.mrf.mxu0
    %v686 = vadd.f32 %v557, %v685
    %v687 = vpop.f32.mrf.mxu0
    %688 = vmatprep.mubr.f32.mxu0 0.0
    %689 = vmatmul.mubr.f32.gmra.mxu0 %v587
    %v690 = vpop.f32.mrf.mxu0
    %v691 = vadd.f32 %v562, %v690
    %v692 = vpop.f32.mrf.mxu0
    %693 = vdwg.mxu0
    %v694 = vlaneseq
    %v695 = vshrl.u32 %v694, 7
    %v696 = vsub.s32 0, %v695
    %v697 = vrot.slane %v31, %v696
    %v698 = vadd.f32 %v656, %v697
    %v699 = vadd.f32 %v661, %v697
    %v700 = vadd.f32 %v666, %v697
    %v701 = vadd.f32 %v671, %v697
    %v702 = vadd.f32 %v676, %v697
    %v703 = vadd.f32 %v681, %v697
    %v704 = vadd.f32 %v686, %v697
    %v705 = vadd.f32 %v691, %v697
    %v707 = vsel %vm242, 0.0, 0
    %709 = vmatprep.subr.mxu0 0.0
    %710 = vmatpush1.msra.mxu0 0.0
    %711 = vmatprep.subr.mxu0 0.0
    %712 = vmatpush1.msra.mxu0 0.0
    %713 = vmatprep.subr.mxu0 0.0
    %714 = vmatpush1.msra.mxu0 0.0
    %715 = vmatprep.subr.mxu0 0.0
    %716 = vmatpush1.msra.mxu0 0.0
    %717 = vmatprep.subr.mxu0 0.0
    %718 = vmatpush1.msra.mxu0 0.0
    %719 = vmatprep.subr.mxu0 0.0
    %720 = vmatpush1.msra.mxu0 0.0
    %721 = vmatprep.subr.mxu0 0.0
    %722 = vmatpush1.msra.mxu0 0.0
    %723 = vmatprep.subr.mxu0 0.0
    %724 = vmatpush1.msra.mxu0 0.0
    %725 = vmatprep.subr.mxu0 0.0
    %726 = vmatpush1.msra.mxu0 0.0
    %727 = vmatprep.subr.mxu0 0.0
    %728 = vmatpush1.msra.mxu0 0.0
    %729 = vmatprep.subr.mxu0 0.0
    %730 = vmatpush1.msra.mxu0 0.0
    %731 = vmatprep.subr.mxu0 0.0
    %732 = vmatpush1.msra.mxu0 0.0
    %733 = vmatprep.subr.mxu0 0.0
    %734 = vmatpush1.msra.mxu0 %v26
    %735 = vmatprep.subr.mxu0 0.0
    %736 = vmatpush1.msra.mxu0 %v25
    %737 = vmatprep.subr.mxu0 0.0
    %738 = vmatpush1.msra.mxu0 %v24
    %739 = vmatprep.subr.mxu0 0.0
    %740 = vmatpush1.msra.mxu0 %v23
    %741 = vmatprep.subr.mxu0 0.0
    %742 = vmatpush2.msra.mxu0 0.0
    %743 = vmatprep.subr.mxu0 0.0
    %744 = vmatpush2.msra.mxu0 0.0
    %745 = vmatprep.subr.mxu0 0.0
    %746 = vmatpush2.msra.mxu0 0.0
    %747 = vmatprep.subr.mxu0 0.0
    %748 = vmatpush2.msra.mxu0 0.0
    %749 = vmatprep.subr.mxu0 0.0
    %750 = vmatpush2.msra.mxu0 0.0
    %751 = vmatprep.subr.mxu0 0.0
    %752 = vmatpush2.msra.mxu0 0.0
    %753 = vmatprep.subr.mxu0 0.0
    %754 = vmatpush2.msra.mxu0 0.0
    %755 = vmatprep.subr.mxu0 0.0
    %756 = vmatpush2.msra.mxu0 0.0
    %757 = vmatprep.subr.mxu0 0.0
    %758 = vmatpush2.msra.mxu0 0.0
    %759 = vmatprep.subr.mxu0 0.0
    %760 = vmatpush2.msra.mxu0 0.0
    %761 = vmatprep.subr.mxu0 0.0
    %762 = vmatpush2.msra.mxu0 0.0
    %763 = vmatprep.subr.mxu0 0.0
    %764 = vmatpush2.msra.mxu0 0.0
    %765 = vmatprep.subr.mxu0 0.0
    %766 = vmatpush2.msra.mxu0 0.0
    %767 = vmatprep.subr.mxu0 0.0
    %768 = vmatpush2.msra.mxu0 0.0
    %769 = vmatprep.subr.mxu0 0.0
    %770 = vmatpush2.msra.mxu0 0.0
    %771 = vmatprep.subr.mxu0 0.0
    %772 = vmatpush2.msra.mxu0 0.0
    %773 = vmatprep.mubr.f32.mxu0 0.0
    %774 = vmatmul.mubr.f32.gmra.mxu0 %v707
    %v775 = vpop.f32.mrf.mxu0
    %v776 = vadd.f32 0.0, %v775
    %v777 = vpop.f32.mrf.mxu0
    %778 = vdwg.mxu0
    %v779 = vadd.f32 %v698, %v776
    %v780 = vxor.u32 %v779, 2147483648
    %v781 = vmul.f32 %v780, 1.442695
    %v782 = vpow.pop %v781
    %v783 = vadd.f32 %v782, 1.0
    %v784 = vrcp.pop %v783
    %v785 = vmul.f32 1.0, %v784
    %v786 = vtanh.pop %v779
    %v787 = vmul.f32 %v785, 0.0
    %789 = vrot.lane.b32.xlu0 %v786, 64
    %v790 = vpop.permute.xlu0 %789
    %v792 = vmul.f32 %v785, %v790
    %794 = vrot.lane.b32.xlu0 %v792, 32
    %v795 = vpop.permute.xlu0 %794
    %v797 = vadd.f32 %v787, %v795
    %v798 = vtanh.pop %v797
    %800 = vrot.lane.b32.xlu0 %v798, 64
    %v801 = vpop.permute.xlu0 %800
    %v803 = vmul.f32 %v785, %v801
    %805 = vrot.lane.b32.xlu0 %v803, 32
    %v806 = vpop.permute.xlu0 %805
    %v808 = vsel %vm81, %v806, 0.0
    %810 = vrot.lane.b32.xlu0 %v797, 96
    %v811 = vpop.permute.xlu0 %810
    %v813 = vsel %vm81, %v811, 0.0
    %v815 = vsel %vm242, %v808, 0
    %817 = vmatprep.subr.mxu0 0.0
    %818 = vmatpush1.msra.mxu0 0.0
    %819 = vmatprep.subr.mxu0 0.0
    %820 = vmatpush1.msra.mxu0 0.0
    %821 = vmatprep.subr.mxu0 0.0
    %822 = vmatpush1.msra.mxu0 0.0
    %823 = vmatprep.subr.mxu0 0.0
    %824 = vmatpush1.msra.mxu0 0.0
    %825 = vmatprep.subr.mxu0 0.0
    %826 = vmatpush1.msra.mxu0 0.0
    %827 = vmatprep.subr.mxu0 0.0
    %828 = vmatpush1.msra.mxu0 0.0
    %829 = vmatprep.subr.mxu0 0.0
    %830 = vmatpush1.msra.mxu0 0.0
    %831 = vmatprep.subr.mxu0 0.0
    %832 = vmatpush1.msra.mxu0 0.0
    %833 = vmatprep.subr.mxu0 0.0
    %834 = vmatpush1.msra.mxu0 0.0
    %835 = vmatprep.subr.mxu0 0.0
    %836 = vmatpush1.msra.mxu0 0.0
    %837 = vmatprep.subr.mxu0 0.0
    %838 = vmatpush1.msra.mxu0 0.0
    %839 = vmatprep.subr.mxu0 0.0
    %840 = vmatpush1.msra.mxu0 0.0
    %841 = vmatprep.subr.mxu0 0.0
    %842 = vmatpush1.msra.mxu0 %v26
    %843 = vmatprep.subr.mxu0 0.0
    %844 = vmatpush1.msra.mxu0 %v25
    %845 = vmatprep.subr.mxu0 0.0
    %846 = vmatpush1.msra.mxu0 %v24
    %847 = vmatprep.subr.mxu0 0.0
    %848 = vmatpush1.msra.mxu0 %v23
    %849 = vmatprep.subr.mxu0 0.0
    %850 = vmatpush2.msra.mxu0 0.0
    %851 = vmatprep.subr.mxu0 0.0
    %852 = vmatpush2.msra.mxu0 0.0
    %853 = vmatprep.subr.mxu0 0.0
    %854 = vmatpush2.msra.mxu0 0.0
    %855 = vmatprep.subr.mxu0 0.0
    %856 = vmatpush2.msra.mxu0 0.0
    %857 = vmatprep.subr.mxu0 0.0
    %858 = vmatpush2.msra.mxu0 0.0
    %859 = vmatprep.subr.mxu0 0.0
    %860 = vmatpush2.msra.mxu0 0.0
    %861 = vmatprep.subr.mxu0 0.0
    %862 = vmatpush2.msra.mxu0 0.0
    %863 = vmatprep.subr.mxu0 0.0
    %864 = vmatpush2.msra.mxu0 0.0
    %865 = vmatprep.subr.mxu0 0.0
    %866 = vmatpush2.msra.mxu0 0.0
    %867 = vmatprep.subr.mxu0 0.0
    %868 = vmatpush2.msra.mxu0 0.0
    %869 = vmatprep.subr.mxu0 0.0
    %870 = vmatpush2.msra.mxu0 0.0
    %871 = vmatprep.subr.mxu0 0.0
    %872 = vmatpush2.msra.mxu0 0.0
    %873 = vmatprep.subr.mxu0 0.0
    %874 = vmatpush2.msra.mxu0 0.0
    %875 = vmatprep.subr.mxu0 0.0
    %876 = vmatpush2.msra.mxu0 0.0
    %877 = vmatprep.subr.mxu0 0.0
    %878 = vmatpush2.msra.mxu0 0.0
    %879 = vmatprep.subr.mxu0 0.0
    %880 = vmatpush2.msra.mxu0 0.0
    %881 = vmatprep.mubr.f32.mxu0 0.0
    %882 = vmatmul.mubr.f32.gmra.mxu0 %v815
    %v883 = vpop.f32.mrf.mxu0
    %v884 = vadd.f32 0.0, %v883
    %v885 = vpop.f32.mrf.mxu0
    %886 = vdwg.mxu0
    %v887 = vadd.f32 %v699, %v884
    %v888 = vxor.u32 %v887, 2147483648
    %v889 = vmul.f32 %v888, 1.442695
    %v890 = vpow.pop %v889
    %v891 = vadd.f32 %v890, 1.0
    %v892 = vrcp.pop %v891
    %v893 = vmul.f32 1.0, %v892
    %v894 = vtanh.pop %v887
    %896 = vrot.lane.b32.xlu0 %v813, 32
    %v897 = vpop.permute.xlu0 %896
    %v899 = vmul.f32 %v893, %v897
    %901 = vrot.lane.b32.xlu0 %v894, 64
    %v902 = vpop.permute.xlu0 %901
    %v904 = vmul.f32 %v893, %v902
    %906 = vrot.lane.b32.xlu0 %v904, 32
    %v907 = vpop.permute.xlu0 %906
    %v909 = vadd.f32 %v899, %v907
    %v910 = vtanh.pop %v909
    %912 = vrot.lane.b32.xlu0 %v910, 64
    %v913 = vpop.permute.xlu0 %912
    %v915 = vmul.f32 %v893, %v913
    %917 = vrot.lane.b32.xlu0 %v915, 32
    %v918 = vpop.permute.xlu0 %917
    %v920 = vsel %vm82, %v918, %v808
    %922 = vrot.lane.b32.xlu0 %v909, 96
    %v923 = vpop.permute.xlu0 %922
    %v925 = vsel %vm82, %v923, %v813
    %v927 = vsel %vm242, %v920, 0
    %929 = vmatprep.subr.mxu0 0.0
    %930 = vmatpush1.msra.mxu0 0.0
    %931 = vmatprep.subr.mxu0 0.0
    %932 = vmatpush1.msra.mxu0 0.0
    %933 = vmatprep.subr.mxu0 0.0
    %934 = vmatpush1.msra.mxu0 0.0
    %935 = vmatprep.subr.mxu0 0.0
    %936 = vmatpush1.msra.mxu0 0.0
    %937 = vmatprep.subr.mxu0 0.0
    %938 = vmatpush1.msra.mxu0 0.0
    %939 = vmatprep.subr.mxu0 0.0
    %940 = vmatpush1.msra.mxu0 0.0
    %941 = vmatprep.subr.mxu0 0.0
    %942 = vmatpush1.msra.mxu0 0.0
    %943 = vmatprep.subr.mxu0 0.0
    %944 = vmatpush1.msra.mxu0 0.0
    %945 = vmatprep.subr.mxu0 0.0
    %946 = vmatpush1.msra.mxu0 0.0
    %947 = vmatprep.subr.mxu0 0.0
    %948 = vmatpush1.msra.mxu0 0.0
    %949 = vmatprep.subr.mxu0 0.0
    %950 = vmatpush1.msra.mxu0 0.0
    %951 = vmatprep.subr.mxu0 0.0
    %952 = vmatpush1.msra.mxu0 0.0
    %953 = vmatprep.subr.mxu0 0.0
    %954 = vmatpush1.msra.mxu0 %v26
    %955 = vmatprep.subr.mxu0 0.0
    %956 = vmatpush1.msra.mxu0 %v25
    %957 = vmatprep.subr.mxu0 0.0
    %958 = vmatpush1.msra.mxu0 %v24
    %959 = vmatprep.subr.mxu0 0.0
    %960 = vmatpush1.msra.mxu0 %v23
    %961 = vmatprep.subr.mxu0 0.0
    %962 = vmatpush2.msra.mxu0 0.0
    %963 = vmatprep.subr.mxu0 0.0
    %964 = vmatpush2.msra.mxu0 0.0
    %965 = vmatprep.subr.mxu0 0.0
    %966 = vmatpush2.msra.mxu0 0.0
    %967 = vmatprep.subr.mxu0 0.0
    %968 = vmatpush2.msra.mxu0 0.0
    %969 = vmatprep.subr.mxu0 0.0
    %970 = vmatpush2.msra.mxu0 0.0
    %971 = vmatprep.subr.mxu0 0.0
    %972 = vmatpush2.msra.mxu0 0.0
    %973 = vmatprep.subr.mxu0 0.0
    %974 = vmatpush2.msra.mxu0 0.0
    %975 = vmatprep.subr.mxu0 0.0
    %976 = vmatpush2.msra.mxu0 0.0
    %977 = vmatprep.subr.mxu0 0.0
    %978 = vmatpush2.msra.mxu0 0.0
    %979 = vmatprep.subr.mxu0 0.0
    %980 = vmatpush2.msra.mxu0 0.0
    %981 = vmatprep.subr.mxu0 0.0
    %982 = vmatpush2.msra.mxu0 0.0
    %983 = vmatprep.subr.mxu0 0.0
    %984 = vmatpush2.msra.mxu0 0.0
    %985 = vmatprep.subr.mxu0 0.0
    %986 = vmatpush2.msra.mxu0 0.0
    %987 = vmatprep.subr.mxu0 0.0
    %988 = vmatpush2.msra.mxu0 0.0
    %989 = vmatprep.subr.mxu0 0.0
    %990 = vmatpush2.msra.mxu0 0.0
    %991 = vmatprep.subr.mxu0 0.0
    %992 = vmatpush2.msra.mxu0 0.0
    %993 = vmatprep.mubr.f32.mxu0 0.0
    %994 = vmatmul.mubr.f32.gmra.mxu0 %v927
    %v995 = vpop.f32.mrf.mxu0
    %v996 = vadd.f32 0.0, %v995
    %v997 = vpop.f32.mrf.mxu0
    %998 = vdwg.mxu0
    %v999 = vadd.f32 %v700, %v996
    %v1000 = vxor.u32 %v999, 2147483648
    %v1001 = vmul.f32 %v1000, 1.442695
    %v1002 = vpow.pop %v1001
    %v1003 = vadd.f32 %v1002, 1.0
    %v1004 = vrcp.pop %v1003
    %v1005 = vmul.f32 1.0, %v1004
    %v1006 = vtanh.pop %v999
    %1008 = vrot.lane.b32.xlu0 %v925, 32
    %v1009 = vpop.permute.xlu0 %1008
    %v1011 = vmul.f32 %v1005, %v1009
    %1013 = vrot.lane.b32.xlu0 %v1006, 64
    %v1014 = vpop.permute.xlu0 %1013
    %v1016 = vmul.f32 %v1005, %v1014
    %1018 = vrot.lane.b32.xlu0 %v1016, 32
    %v1019 = vpop.permute.xlu0 %1018
    %v1021 = vadd.f32 %v1011, %v1019
    %v1022 = vtanh.pop %v1021
    %1024 = vrot.lane.b32.xlu0 %v1022, 64
    %v1025 = vpop.permute.xlu0 %1024
    %v1027 = vmul.f32 %v1005, %v1025
    %1029 = vrot.lane.b32.xlu0 %v1027, 32
    %v1030 = vpop.permute.xlu0 %1029
    %v1032 = vsel %vm83, %v1030, %v920
    %1034 = vrot.lane.b32.xlu0 %v1021, 96
    %v1035 = vpop.permute.xlu0 %1034
    %v1037 = vsel %vm83, %v1035, %v925
    %v1039 = vsel %vm242, %v1032, 0
    %1041 = vmatprep.subr.mxu0 0.0
    %1042 = vmatpush1.msra.mxu0 0.0
    %1043 = vmatprep.subr.mxu0 0.0
    %1044 = vmatpush1.msra.mxu0 0.0
    %1045 = vmatprep.subr.mxu0 0.0
    %1046 = vmatpush1.msra.mxu0 0.0
    %1047 = vmatprep.subr.mxu0 0.0
    %1048 = vmatpush1.msra.mxu0 0.0
    %1049 = vmatprep.subr.mxu0 0.0
    %1050 = vmatpush1.msra.mxu0 0.0
    %1051 = vmatprep.subr.mxu0 0.0
    %1052 = vmatpush1.msra.mxu0 0.0
    %1053 = vmatprep.subr.mxu0 0.0
    %1054 = vmatpush1.msra.mxu0 0.0
    %1055 = vmatprep.subr.mxu0 0.0
    %1056 = vmatpush1.msra.mxu0 0.0
    %1057 = vmatprep.subr.mxu0 0.0
    %1058 = vmatpush1.msra.mxu0 0.0
    %1059 = vmatprep.subr.mxu0 0.0
    %1060 = vmatpush1.msra.mxu0 0.0
    %1061 = vmatprep.subr.mxu0 0.0
    %1062 = vmatpush1.msra.mxu0 0.0
    %1063 = vmatprep.subr.mxu0 0.0
    %1064 = vmatpush1.msra.mxu0 0.0
    %1065 = vmatprep.subr.mxu0 0.0
    %1066 = vmatpush1.msra.mxu0 %v26
    %1067 = vmatprep.subr.mxu0 0.0
    %1068 = vmatpush1.msra.mxu0 %v25
    %1069 = vmatprep.subr.mxu0 0.0
    %1070 = vmatpush1.msra.mxu0 %v24
    %1071 = vmatprep.subr.mxu0 0.0
    %1072 = vmatpush1.msra.mxu0 %v23
    %1073 = vmatprep.subr.mxu0 0.0
    %1074 = vmatpush2.msra.mxu0 0.0
    %1075 = vmatprep.subr.mxu0 0.0
    %1076 = vmatpush2.msra.mxu0 0.0
    %1077 = vmatprep.subr.mxu0 0.0
    %1078 = vmatpush2.msra.mxu0 0.0
    %1079 = vmatprep.subr.mxu0 0.0
    %1080 = vmatpush2.msra.mxu0 0.0
    %1081 = vmatprep.subr.mxu0 0.0
    %1082 = vmatpush2.msra.mxu0 0.0
    %1083 = vmatprep.subr.mxu0 0.0
    %1084 = vmatpush2.msra.mxu0 0.0
    %1085 = vmatprep.subr.mxu0 0.0
    %1086 = vmatpush2.msra.mxu0 0.0
    %1087 = vmatprep.subr.mxu0 0.0
    %1088 = vmatpush2.msra.mxu0 0.0
    %1089 = vmatprep.subr.mxu0 0.0
    %1090 = vmatpush2.msra.mxu0 0.0
    %1091 = vmatprep.subr.mxu0 0.0
    %1092 = vmatpush2.msra.mxu0 0.0
    %1093 = vmatprep.subr.mxu0 0.0
    %1094 = vmatpush2.msra.mxu0 0.0
    %1095 = vmatprep.subr.mxu0 0.0
    %1096 = vmatpush2.msra.mxu0 0.0
    %1097 = vmatprep.subr.mxu0 0.0
    %1098 = vmatpush2.msra.mxu0 0.0
    %1099 = vmatprep.subr.mxu0 0.0
    %1100 = vmatpush2.msra.mxu0 0.0
    %1101 = vmatprep.subr.mxu0 0.0
    %1102 = vmatpush2.msra.mxu0 0.0
    %1103 = vmatprep.subr.mxu0 0.0
    %1104 = vmatpush2.msra.mxu0 0.0
    %1105 = vmatprep.mubr.f32.mxu0 0.0
    %1106 = vmatmul.mubr.f32.gmra.mxu0 %v1039
    %v1107 = vpop.f32.mrf.mxu0
    %v1108 = vadd.f32 0.0, %v1107
    %v1109 = vpop.f32.mrf.mxu0
    %1110 = vdwg.mxu0
    %v1111 = vadd.f32 %v701, %v1108
    %v1112 = vxor.u32 %v1111, 2147483648
    %v1113 = vmul.f32 %v1112, 1.442695
    %v1114 = vpow.pop %v1113
    %v1115 = vadd.f32 %v1114, 1.0
    %v1116 = vrcp.pop %v1115
    %v1117 = vmul.f32 1.0, %v1116
    %v1118 = vtanh.pop %v1111
    %1120 = vrot.lane.b32.xlu0 %v1037, 32
    %v1121 = vpop.permute.xlu0 %1120
    %v1123 = vmul.f32 %v1117, %v1121
    %1125 = vrot.lane.b32.xlu0 %v1118, 64
    %v1126 = vpop.permute.xlu0 %1125
    %v1128 = vmul.f32 %v1117, %v1126
    %1130 = vrot.lane.b32.xlu0 %v1128, 32
    %v1131 = vpop.permute.xlu0 %1130
    %v1133 = vadd.f32 %v1123, %v1131
    %v1134 = vtanh.pop %v1133
    %1136 = vrot.lane.b32.xlu0 %v1134, 64
    %v1137 = vpop.permute.xlu0 %1136
    %v1139 = vmul.f32 %v1117, %v1137
    %1141 = vrot.lane.b32.xlu0 %v1139, 32
    %v1142 = vpop.permute.xlu0 %1141
    %v1144 = vsel %vm84, %v1142, %v1032
    %1146 = vrot.lane.b32.xlu0 %v1133, 96
    %v1147 = vpop.permute.xlu0 %1146
    %v1149 = vsel %vm84, %v1147, %v1037
    %v1151 = vsel %vm242, %v1144, 0
    %1153 = vmatprep.subr.mxu0 0.0
    %1154 = vmatpush1.msra.mxu0 0.0
    %1155 = vmatprep.subr.mxu0 0.0
    %1156 = vmatpush1.msra.mxu0 0.0
    %1157 = vmatprep.subr.mxu0 0.0
    %1158 = vmatpush1.msra.mxu0 0.0
    %1159 = vmatprep.subr.mxu0 0.0
    %1160 = vmatpush1.msra.mxu0 0.0
    %1161 = vmatprep.subr.mxu0 0.0
    %1162 = vmatpush1.msra.mxu0 0.0
    %1163 = vmatprep.subr.mxu0 0.0
    %1164 = vmatpush1.msra.mxu0 0.0
    %1165 = vmatprep.subr.mxu0 0.0
    %1166 = vmatpush1.msra.mxu0 0.0
    %1167 = vmatprep.subr.mxu0 0.0
    %1168 = vmatpush1.msra.mxu0 0.0
    %1169 = vmatprep.subr.mxu0 0.0
    %1170 = vmatpush1.msra.mxu0 0.0
    %1171 = vmatprep.subr.mxu0 0.0
    %1172 = vmatpush1.msra.mxu0 0.0
    %1173 = vmatprep.subr.mxu0 0.0
    %1174 = vmatpush1.msra.mxu0 0.0
    %1175 = vmatprep.subr.mxu0 0.0
    %1176 = vmatpush1.msra.mxu0 0.0
    %1177 = vmatprep.subr.mxu0 0.0
    %1178 = vmatpush1.msra.mxu0 %v26
    %1179 = vmatprep.subr.mxu0 0.0
    %1180 = vmatpush1.msra.mxu0 %v25
    %1181 = vmatprep.subr.mxu0 0.0
    %1182 = vmatpush1.msra.mxu0 %v24
    %1183 = vmatprep.subr.mxu0 0.0
    %1184 = vmatpush1.msra.mxu0 %v23
    %1185 = vmatprep.subr.mxu0 0.0
    %1186 = vmatpush2.msra.mxu0 0.0
    %1187 = vmatprep.subr.mxu0 0.0
    %1188 = vmatpush2.msra.mxu0 0.0
    %1189 = vmatprep.subr.mxu0 0.0
    %1190 = vmatpush2.msra.mxu0 0.0
    %1191 = vmatprep.subr.mxu0 0.0
    %1192 = vmatpush2.msra.mxu0 0.0
    %1193 = vmatprep.subr.mxu0 0.0
    %1194 = vmatpush2.msra.mxu0 0.0
    %1195 = vmatprep.subr.mxu0 0.0
    %1196 = vmatpush2.msra.mxu0 0.0
    %1197 = vmatprep.subr.mxu0 0.0
    %1198 = vmatpush2.msra.mxu0 0.0
    %1199 = vmatprep.subr.mxu0 0.0
    %1200 = vmatpush2.msra.mxu0 0.0
    %1201 = vmatprep.subr.mxu0 0.0
    %1202 = vmatpush2.msra.mxu0 0.0
    %1203 = vmatprep.subr.mxu0 0.0
    %1204 = vmatpush2.msra.mxu0 0.0
    %1205 = vmatprep.subr.mxu0 0.0
    %1206 = vmatpush2.msra.mxu0 0.0
    %1207 = vmatprep.subr.mxu0 0.0
    %1208 = vmatpush2.msra.mxu0 0.0
    %1209 = vmatprep.subr.mxu0 0.0
    %1210 = vmatpush2.msra.mxu0 0.0
    %1211 = vmatprep.subr.mxu0 0.0
    %1212 = vmatpush2.msra.mxu0 0.0
    %1213 = vmatprep.subr.mxu0 0.0
    %1214 = vmatpush2.msra.mxu0 0.0
    %1215 = vmatprep.subr.mxu0 0.0
    %1216 = vmatpush2.msra.mxu0 0.0
    %1217 = vmatprep.mubr.f32.mxu0 0.0
    %1218 = vmatmul.mubr.f32.gmra.mxu0 %v1151
    %v1219 = vpop.f32.mrf.mxu0
    %v1220 = vadd.f32 0.0, %v1219
    %v1221 = vpop.f32.mrf.mxu0
    %1222 = vdwg.mxu0
    %v1223 = vadd.f32 %v702, %v1220
    %v1224 = vxor.u32 %v1223, 2147483648
    %v1225 = vmul.f32 %v1224, 1.442695
    %v1226 = vpow.pop %v1225
    %v1227 = vadd.f32 %v1226, 1.0
    %v1228 = vrcp.pop %v1227
    %v1229 = vmul.f32 1.0, %v1228
    %v1230 = vtanh.pop %v1223
    %1232 = vrot.lane.b32.xlu0 %v1149, 32
    %v1233 = vpop.permute.xlu0 %1232
    %v1235 = vmul.f32 %v1229, %v1233
    %1237 = vrot.lane.b32.xlu0 %v1230, 64
    %v1238 = vpop.permute.xlu0 %1237
    %v1240 = vmul.f32 %v1229, %v1238
    %1242 = vrot.lane.b32.xlu0 %v1240, 32
    %v1243 = vpop.permute.xlu0 %1242
    %v1245 = vadd.f32 %v1235, %v1243
    %v1246 = vtanh.pop %v1245
    %1248 = vrot.lane.b32.xlu0 %v1246, 64
    %v1249 = vpop.permute.xlu0 %1248
    %v1251 = vmul.f32 %v1229, %v1249
    %1253 = vrot.lane.b32.xlu0 %v1251, 32
    %v1254 = vpop.permute.xlu0 %1253
    %v1256 = vsel %vm85, %v1254, %v1144
    %1258 = vrot.lane.b32.xlu0 %v1245, 96
    %v1259 = vpop.permute.xlu0 %1258
    %v1261 = vsel %vm85, %v1259, %v1149
    %v1263 = vsel %vm242, %v1256, 0
    %1265 = vmatprep.subr.mxu0 0.0
    %1266 = vmatpush1.msra.mxu0 0.0
    %1267 = vmatprep.subr.mxu0 0.0
    %1268 = vmatpush1.msra.mxu0 0.0
    %1269 = vmatprep.subr.mxu0 0.0
    %1270 = vmatpush1.msra.mxu0 0.0
    %1271 = vmatprep.subr.mxu0 0.0
    %1272 = vmatpush1.msra.mxu0 0.0
    %1273 = vmatprep.subr.mxu0 0.0
    %1274 = vmatpush1.msra.mxu0 0.0
    %1275 = vmatprep.subr.mxu0 0.0
    %1276 = vmatpush1.msra.mxu0 0.0
    %1277 = vmatprep.subr.mxu0 0.0
    %1278 = vmatpush1.msra.mxu0 0.0
    %1279 = vmatprep.subr.mxu0 0.0
    %1280 = vmatpush1.msra.mxu0 0.0
    %1281 = vmatprep.subr.mxu0 0.0
    %1282 = vmatpush1.msra.mxu0 0.0
    %1283 = vmatprep.subr.mxu0 0.0
    %1284 = vmatpush1.msra.mxu0 0.0
    %1285 = vmatprep.subr.mxu0 0.0
    %1286 = vmatpush1.msra.mxu0 0.0
    %1287 = vmatprep.subr.mxu0 0.0
    %1288 = vmatpush1.msra.mxu0 0.0
    %1289 = vmatprep.subr.mxu0 0.0
    %1290 = vmatpush1.msra.mxu0 %v26
    %1291 = vmatprep.subr.mxu0 0.0
    %1292 = vmatpush1.msra.mxu0 %v25
    %1293 = vmatprep.subr.mxu0 0.0
    %1294 = vmatpush1.msra.mxu0 %v24
    %1295 = vmatprep.subr.mxu0 0.0
    %1296 = vmatpush1.msra.mxu0 %v23
    %1297 = vmatprep.subr.mxu0 0.0
    %1298 = vmatpush2.msra.mxu0 0.0
    %1299 = vmatprep.subr.mxu0 0.0
    %1300 = vmatpush2.msra.mxu0 0.0
    %1301 = vmatprep.subr.mxu0 0.0
    %1302 = vmatpush2.msra.mxu0 0.0
    %1303 = vmatprep.subr.mxu0 0.0
    %1304 = vmatpush2.msra.mxu0 0.0
    %1305 = vmatprep.subr.mxu0 0.0
    %1306 = vmatpush2.msra.mxu0 0.0
    %1307 = vmatprep.subr.mxu0 0.0
    %1308 = vmatpush2.msra.mxu0 0.0
    %1309 = vmatprep.subr.mxu0 0.0
    %1310 = vmatpush2.msra.mxu0 0.0
    %1311 = vmatprep.subr.mxu0 0.0
    %1312 = vmatpush2.msra.mxu0 0.0
    %1313 = vmatprep.subr.mxu0 0.0
    %1314 = vmatpush2.msra.mxu0 0.0
    %1315 = vmatprep.subr.mxu0 0.0
    %1316 = vmatpush2.msra.mxu0 0.0
    %1317 = vmatprep.subr.mxu0 0.0
    %1318 = vmatpush2.msra.mxu0 0.0
    %1319 = vmatprep.subr.mxu0 0.0
    %1320 = vmatpush2.msra.mxu0 0.0
    %1321 = vmatprep.subr.mxu0 0.0
    %1322 = vmatpush2.msra.mxu0 0.0
    %1323 = vmatprep.subr.mxu0 0.0
    %1324 = vmatpush2.msra.mxu0 0.0
    %1325 = vmatprep.subr.mxu0 0.0
    %1326 = vmatpush2.msra.mxu0 0.0
    %1327 = vmatprep.subr.mxu0 0.0
    %1328 = vmatpush2.msra.mxu0 0.0
    %1329 = vmatprep.mubr.f32.mxu0 0.0
    %1330 = vmatmul.mubr.f32.gmra.mxu0 %v1263
    %v1331 = vpop.f32.mrf.mxu0
    %v1332 = vadd.f32 0.0, %v1331
    %v1333 = vpop.f32.mrf.mxu0
    %1334 = vdwg.mxu0
    %v1335 = vadd.f32 %v703, %v1332
    %v1336 = vxor.u32 %v1335, 2147483648
    %v1337 = vmul.f32 %v1336, 1.442695
    %v1338 = vpow.pop %v1337
    %v1339 = vadd.f32 %v1338, 1.0
    %v1340 = vrcp.pop %v1339
    %v1341 = vmul.f32 1.0, %v1340
    %v1342 = vtanh.pop %v1335
    %1344 = vrot.lane.b32.xlu0 %v1261, 32
    %v1345 = vpop.permute.xlu0 %1344
    %v1347 = vmul.f32 %v1341, %v1345
    %1349 = vrot.lane.b32.xlu0 %v1342, 64
    %v1350 = vpop.permute.xlu0 %1349
    %v1352 = vmul.f32 %v1341, %v1350
    %1354 = vrot.lane.b32.xlu0 %v1352, 32
    %v1355 = vpop.permute.xlu0 %1354
    %v1357 = vadd.f32 %v1347, %v1355
    %v1358 = vtanh.pop %v1357
    %1360 = vrot.lane.b32.xlu0 %v1358, 64
    %v1361 = vpop.permute.xlu0 %1360
    %v1363 = vmul.f32 %v1341, %v1361
    %1365 = vrot.lane.b32.xlu0 %v1363, 32
    %v1366 = vpop.permute.xlu0 %1365
    %v1368 = vsel %vm86, %v1366, %v1256
    %1370 = vrot.lane.b32.xlu0 %v1357, 96
    %v1371 = vpop.permute.xlu0 %1370
    %v1373 = vsel %vm86, %v1371, %v1261
    %v1375 = vsel %vm242, %v1368, 0
    %1377 = vmatprep.subr.mxu0 0.0
    %1378 = vmatpush1.msra.mxu0 0.0
    %1379 = vmatprep.subr.mxu0 0.0
    %1380 = vmatpush1.msra.mxu0 0.0
    %1381 = vmatprep.subr.mxu0 0.0
    %1382 = vmatpush1.msra.mxu0 0.0
    %1383 = vmatprep.subr.mxu0 0.0
    %1384 = vmatpush1.msra.mxu0 0.0
    %1385 = vmatprep.subr.mxu0 0.0
    %1386 = vmatpush1.msra.mxu0 0.0
    %1387 = vmatprep.subr.mxu0 0.0
    %1388 = vmatpush1.msra.mxu0 0.0
    %1389 = vmatprep.subr.mxu0 0.0
    %1390 = vmatpush1.msra.mxu0 0.0
    %1391 = vmatprep.subr.mxu0 0.0
    %1392 = vmatpush1.msra.mxu0 0.0
    %1393 = vmatprep.subr.mxu0 0.0
    %1394 = vmatpush1.msra.mxu0 0.0
    %1395 = vmatprep.subr.mxu0 0.0
    %1396 = vmatpush1.msra.mxu0 0.0
    %1397 = vmatprep.subr.mxu0 0.0
    %1398 = vmatpush1.msra.mxu0 0.0
    %1399 = vmatprep.subr.mxu0 0.0
    %1400 = vmatpush1.msra.mxu0 0.0
    %1401 = vmatprep.subr.mxu0 0.0
    %1402 = vmatpush1.msra.mxu0 %v26
    %1403 = vmatprep.subr.mxu0 0.0
    %1404 = vmatpush1.msra.mxu0 %v25
    %1405 = vmatprep.subr.mxu0 0.0
    %1406 = vmatpush1.msra.mxu0 %v24
    %1407 = vmatprep.subr.mxu0 0.0
    %1408 = vmatpush1.msra.mxu0 %v23
    %1409 = vmatprep.subr.mxu0 0.0
    %1410 = vmatpush2.msra.mxu0 0.0
    %1411 = vmatprep.subr.mxu0 0.0
    %1412 = vmatpush2.msra.mxu0 0.0
    %1413 = vmatprep.subr.mxu0 0.0
    %1414 = vmatpush2.msra.mxu0 0.0
    %1415 = vmatprep.subr.mxu0 0.0
    %1416 = vmatpush2.msra.mxu0 0.0
    %1417 = vmatprep.subr.mxu0 0.0
    %1418 = vmatpush2.msra.mxu0 0.0
    %1419 = vmatprep.subr.mxu0 0.0
    %1420 = vmatpush2.msra.mxu0 0.0
    %1421 = vmatprep.subr.mxu0 0.0
    %1422 = vmatpush2.msra.mxu0 0.0
    %1423 = vmatprep.subr.mxu0 0.0
    %1424 = vmatpush2.msra.mxu0 0.0
    %1425 = vmatprep.subr.mxu0 0.0
    %1426 = vmatpush2.msra.mxu0 0.0
    %1427 = vmatprep.subr.mxu0 0.0
    %1428 = vmatpush2.msra.mxu0 0.0
    %1429 = vmatprep.subr.mxu0 0.0
    %1430 = vmatpush2.msra.mxu0 0.0
    %1431 = vmatprep.subr.mxu0 0.0
    %1432 = vmatpush2.msra.mxu0 0.0
    %1433 = vmatprep.subr.mxu0 0.0
    %1434 = vmatpush2.msra.mxu0 0.0
    %1435 = vmatprep.subr.mxu0 0.0
    %1436 = vmatpush2.msra.mxu0 0.0
    %1437 = vmatprep.subr.mxu0 0.0
    %1438 = vmatpush2.msra.mxu0 0.0
    %1439 = vmatprep.subr.mxu0 0.0
    %1440 = vmatpush2.msra.mxu0 0.0
    %1441 = vmatprep.mubr.f32.mxu0 0.0
    %1442 = vmatmul.mubr.f32.gmra.mxu0 %v1375
    %v1443 = vpop.f32.mrf.mxu0
    %v1444 = vadd.f32 0.0, %v1443
    %v1445 = vpop.f32.mrf.mxu0
    %1446 = vdwg.mxu0
    %v1447 = vadd.f32 %v704, %v1444
    %v1448 = vxor.u32 %v1447, 2147483648
    %v1449 = vmul.f32 %v1448, 1.442695
    %v1450 = vpow.pop %v1449
    %v1451 = vadd.f32 %v1450, 1.0
    %v1452 = vrcp.pop %v1451
    %v1453 = vmul.f32 1.0, %v1452
    %v1454 = vtanh.pop %v1447
    %1456 = vrot.lane.b32.xlu0 %v1373, 32
    %v1457 = vpop.permute.xlu0 %1456
    %v1459 = vmul.f32 %v1453, %v1457
    %1461 = vrot.lane.b32.xlu0 %v1454, 64
    %v1462 = vpop.permute.xlu0 %1461
    %v1464 = vmul.f32 %v1453, %v1462
    %1466 = vrot.lane.b32.xlu0 %v1464, 32
    %v1467 = vpop.permute.xlu0 %1466
    %v1469 = vadd.f32 %v1459, %v1467
    %v1470 = vtanh.pop %v1469
    %1472 = vrot.lane.b32.xlu0 %v1470, 64
    %v1473 = vpop.permute.xlu0 %1472
    %v1475 = vmul.f32 %v1453, %v1473
    %1477 = vrot.lane.b32.xlu0 %v1475, 32
    %v1478 = vpop.permute.xlu0 %1477
    %v1480 = vsel %vm87, %v1478, %v1368
    %1482 = vrot.lane.b32.xlu0 %v1469, 96
    %v1483 = vpop.permute.xlu0 %1482
    %v1485 = vsel %vm87, %v1483, %v1373
    %v1487 = vsel %vm242, %v1480, 0
    %1489 = vmatprep.subr.mxu0 0.0
    %1490 = vmatpush1.msra.mxu0 0.0
    %1491 = vmatprep.subr.mxu0 0.0
    %1492 = vmatpush1.msra.mxu0 0.0
    %1493 = vmatprep.subr.mxu0 0.0
    %1494 = vmatpush1.msra.mxu0 0.0
    %1495 = vmatprep.subr.mxu0 0.0
    %1496 = vmatpush1.msra.mxu0 0.0
    %1497 = vmatprep.subr.mxu0 0.0
    %1498 = vmatpush1.msra.mxu0 0.0
    %1499 = vmatprep.subr.mxu0 0.0
    %1500 = vmatpush1.msra.mxu0 0.0
    %1501 = vmatprep.subr.mxu0 0.0
    %1502 = vmatpush1.msra.mxu0 0.0
    %1503 = vmatprep.subr.mxu0 0.0
    %1504 = vmatpush1.msra.mxu0 0.0
    %1505 = vmatprep.subr.mxu0 0.0
    %1506 = vmatpush1.msra.mxu0 0.0
    %1507 = vmatprep.subr.mxu0 0.0
    %1508 = vmatpush1.msra.mxu0 0.0
    %1509 = vmatprep.subr.mxu0 0.0
    %1510 = vmatpush1.msra.mxu0 0.0
    %1511 = vmatprep.subr.mxu0 0.0
    %1512 = vmatpush1.msra.mxu0 0.0
    %1513 = vmatprep.subr.mxu0 0.0
    %1514 = vmatpush1.msra.mxu0 %v26
    %1515 = vmatprep.subr.mxu0 0.0
    %1516 = vmatpush1.msra.mxu0 %v25
    %1517 = vmatprep.subr.mxu0 0.0
    %1518 = vmatpush1.msra.mxu0 %v24
    %1519 = vmatprep.subr.mxu0 0.0
    %1520 = vmatpush1.msra.mxu0 %v23
    %1521 = vmatprep.subr.mxu0 0.0
    %1522 = vmatpush2.msra.mxu0 0.0
    %1523 = vmatprep.subr.mxu0 0.0
    %1524 = vmatpush2.msra.mxu0 0.0
    %1525 = vmatprep.subr.mxu0 0.0
    %1526 = vmatpush2.msra.mxu0 0.0
    %1527 = vmatprep.subr.mxu0 0.0
    %1528 = vmatpush2.msra.mxu0 0.0
    %1529 = vmatprep.subr.mxu0 0.0
    %1530 = vmatpush2.msra.mxu0 0.0
    %1531 = vmatprep.subr.mxu0 0.0
    %1532 = vmatpush2.msra.mxu0 0.0
    %1533 = vmatprep.subr.mxu0 0.0
    %1534 = vmatpush2.msra.mxu0 0.0
    %1535 = vmatprep.subr.mxu0 0.0
    %1536 = vmatpush2.msra.mxu0 0.0
    %1537 = vmatprep.subr.mxu0 0.0
    %1538 = vmatpush2.msra.mxu0 0.0
    %1539 = vmatprep.subr.mxu0 0.0
    %1540 = vmatpush2.msra.mxu0 0.0
    %1541 = vmatprep.subr.mxu0 0.0
    %1542 = vmatpush2.msra.mxu0 0.0
    %1543 = vmatprep.subr.mxu0 0.0
    %1544 = vmatpush2.msra.mxu0 0.0
    %1545 = vmatprep.subr.mxu0 0.0
    %1546 = vmatpush2.msra.mxu0 0.0
    %1547 = vmatprep.subr.mxu0 0.0
    %1548 = vmatpush2.msra.mxu0 0.0
    %1549 = vmatprep.subr.mxu0 0.0
    %1550 = vmatpush2.msra.mxu0 0.0
    %1551 = vmatprep.subr.mxu0 0.0
    %1552 = vmatpush2.msra.mxu0 0.0
    %1553 = vmatprep.mubr.f32.mxu0 0.0
    %1554 = vmatmul.mubr.f32.gmra.mxu0 %v1487
    %v1555 = vpop.f32.mrf.mxu0
    %v1556 = vadd.f32 0.0, %v1555
    %v1557 = vpop.f32.mrf.mxu0
    %1558 = vdwg.mxu0
    %v1559 = vadd.f32 %v705, %v1556
    %v1560 = vxor.u32 %v1559, 2147483648
    %v1561 = vmul.f32 %v1560, 1.442695
    %v1562 = vpow.pop %v1561
    %v1563 = vadd.f32 %v1562, 1.0
    %v1564 = vrcp.pop %v1563
    %v1565 = vmul.f32 1.0, %v1564
    %v1566 = vtanh.pop %v1559
    %1568 = vrot.lane.b32.xlu0 %v1485, 32
    %v1569 = vpop.permute.xlu0 %1568
    %v1571 = vmul.f32 %v1565, %v1569
    %1573 = vrot.lane.b32.xlu0 %v1566, 64
    %v1574 = vpop.permute.xlu0 %1573
    %v1576 = vmul.f32 %v1565, %v1574
    %1578 = vrot.lane.b32.xlu0 %v1576, 32
    %v1579 = vpop.permute.xlu0 %1578
    %v1581 = vadd.f32 %v1571, %v1579
    %v1582 = vtanh.pop %v1581
    %1584 = vrot.lane.b32.xlu0 %v1582, 64
    %v1585 = vpop.permute.xlu0 %1584
    %v1587 = vmul.f32 %v1565, %v1585
    %1589 = vrot.lane.b32.xlu0 %v1587, 32
    %v1590 = vpop.permute.xlu0 %1589
    %v1592 = vsel %vm88, %v1590, %v1480
    %v1593 = vlaneseq
    %v1594 = vshrl.u32 %v1593, 7
    %v1595 = vsub.s32 0, %v1594
    %v1596 = vrot.slane %v72, %v1595
    %v1598 = vsel %vm242, %v1592, 0
    %1600 = vmatprep.subr.mxu0 0.0
    %1601 = vmatpush1.msra.mxu0 0.0
    %1602 = vmatprep.subr.mxu0 0.0
    %1603 = vmatpush1.msra.mxu0 0.0
    %1604 = vmatprep.subr.mxu0 0.0
    %1605 = vmatpush1.msra.mxu0 0.0
    %1606 = vmatprep.subr.mxu0 0.0
    %1607 = vmatpush1.msra.mxu0 0.0
    %1608 = vmatprep.subr.mxu0 0.0
    %1609 = vmatpush1.msra.mxu0 0.0
    %1610 = vmatprep.subr.mxu0 0.0
    %1611 = vmatpush1.msra.mxu0 0.0
    %1612 = vmatprep.subr.mxu0 0.0
    %1613 = vmatpush1.msra.mxu0 0.0
    %1614 = vmatprep.subr.mxu0 0.0
    %1615 = vmatpush1.msra.mxu0 0.0
    %1616 = vmatprep.subr.mxu0 0.0
    %1617 = vmatpush1.msra.mxu0 0.0
    %1618 = vmatprep.subr.mxu0 0.0
    %1619 = vmatpush1.msra.mxu0 0.0
    %1620 = vmatprep.subr.mxu0 0.0
    %1621 = vmatpush1.msra.mxu0 0.0
    %1622 = vmatprep.subr.mxu0 0.0
    %1623 = vmatpush1.msra.mxu0 0.0
    %1624 = vmatprep.subr.mxu0 0.0
    %1625 = vmatpush1.msra.mxu0 %v71
    %1626 = vmatprep.subr.mxu0 0.0
    %1627 = vmatpush1.msra.mxu0 %v70
    %1628 = vmatprep.subr.mxu0 0.0
    %1629 = vmatpush1.msra.mxu0 %v69
    %1630 = vmatprep.subr.mxu0 0.0
    %1631 = vmatpush1.msra.mxu0 %v68
    %1632 = vmatprep.subr.mxu0 0.0
    %1633 = vmatpush2.msra.mxu0 0.0
    %1634 = vmatprep.subr.mxu0 0.0
    %1635 = vmatpush2.msra.mxu0 0.0
    %1636 = vmatprep.subr.mxu0 0.0
    %1637 = vmatpush2.msra.mxu0 0.0
    %1638 = vmatprep.subr.mxu0 0.0
    %1639 = vmatpush2.msra.mxu0 0.0
    %1640 = vmatprep.subr.mxu0 0.0
    %1641 = vmatpush2.msra.mxu0 0.0
    %1642 = vmatprep.subr.mxu0 0.0
    %1643 = vmatpush2.msra.mxu0 0.0
    %1644 = vmatprep.subr.mxu0 0.0
    %1645 = vmatpush2.msra.mxu0 0.0
    %1646 = vmatprep.subr.mxu0 0.0
    %1647 = vmatpush2.msra.mxu0 0.0
    %1648 = vmatprep.subr.mxu0 0.0
    %1649 = vmatpush2.msra.mxu0 0.0
    %1650 = vmatprep.subr.mxu0 0.0
    %1651 = vmatpush2.msra.mxu0 0.0
    %1652 = vmatprep.subr.mxu0 0.0
    %1653 = vmatpush2.msra.mxu0 0.0
    %1654 = vmatprep.subr.mxu0 0.0
    %1655 = vmatpush2.msra.mxu0 0.0
    %1656 = vmatprep.subr.mxu0 0.0
    %1657 = vmatpush2.msra.mxu0 0.0
    %1658 = vmatprep.subr.mxu0 0.0
    %1659 = vmatpush2.msra.mxu0 0.0
    %1660 = vmatprep.subr.mxu0 0.0
    %1661 = vmatpush2.msra.mxu0 0.0
    %1662 = vmatprep.subr.mxu0 0.0
    %1663 = vmatpush2.msra.mxu0 0.0
    %1664 = vmatprep.mubr.f32.mxu0 0.0
    %1665 = vmatmul.mubr.f32.gmra.mxu0 %v1598
    %v1666 = vpop.f32.mrf.mxu0
    %v1667 = vadd.f32 %v1596, %v1666
    %v1668 = vpop.f32.mrf.mxu0
    %1669 = vdwg.mxu0
    %v1670 = vtanh.pop %v1667
    %v1671 = vlaneseq
    %v1672 = vshrl.u32 %v1671, 7
    %v1673 = vsub.s32 0, %v1672
    %v1674 = vrot.slane %v32, %v1673
    %v1676 = vsel %vm242, %v1670, 0
    %1678 = vmatprep.subr.mxu0 0.0
    %1679 = vmatpush1.msra.mxu0 0.0
    %1680 = vmatprep.subr.mxu0 0.0
    %1681 = vmatpush1.msra.mxu0 0.0
    %1682 = vmatprep.subr.mxu0 0.0
    %1683 = vmatpush1.msra.mxu0 0.0
    %1684 = vmatprep.subr.mxu0 0.0
    %1685 = vmatpush1.msra.mxu0 0.0
    %1686 = vmatprep.subr.mxu0 0.0
    %1687 = vmatpush1.msra.mxu0 0.0
    %1688 = vmatprep.subr.mxu0 0.0
    %1689 = vmatpush1.msra.mxu0 0.0
    %1690 = vmatprep.subr.mxu0 0.0
    %1691 = vmatpush1.msra.mxu0 0.0
    %1692 = vmatprep.subr.mxu0 0.0
    %1693 = vmatpush1.msra.mxu0 0.0
    %1694 = vmatprep.subr.mxu0 0.0
    %1695 = vmatpush1.msra.mxu0 0.0
    %1696 = vmatprep.subr.mxu0 0.0
    %1697 = vmatpush1.msra.mxu0 0.0
    %1698 = vmatprep.subr.mxu0 0.0
    %1699 = vmatpush1.msra.mxu0 0.0
    %1700 = vmatprep.subr.mxu0 0.0
    %1701 = vmatpush1.msra.mxu0 0.0
    %1702 = vmatprep.subr.mxu0 0.0
    %1703 = vmatpush1.msra.mxu0 %v30
    %1704 = vmatprep.subr.mxu0 0.0
    %1705 = vmatpush1.msra.mxu0 %v29
    %1706 = vmatprep.subr.mxu0 0.0
    %1707 = vmatpush1.msra.mxu0 %v28
    %1708 = vmatprep.subr.mxu0 0.0
    %1709 = vmatpush1.msra.mxu0 %v27
    %1710 = vmatprep.subr.mxu0 0.0
    %1711 = vmatpush2.msra.mxu0 0.0
    %1712 = vmatprep.subr.mxu0 0.0
    %1713 = vmatpush2.msra.mxu0 0.0
    %1714 = vmatprep.subr.mxu0 0.0
    %1715 = vmatpush2.msra.mxu0 0.0
    %1716 = vmatprep.subr.mxu0 0.0
    %1717 = vmatpush2.msra.mxu0 0.0
    %1718 = vmatprep.subr.mxu0 0.0
    %1719 = vmatpush2.msra.mxu0 0.0
    %1720 = vmatprep.subr.mxu0 0.0
    %1721 = vmatpush2.msra.mxu0 0.0
    %1722 = vmatprep.subr.mxu0 0.0
    %1723 = vmatpush2.msra.mxu0 0.0
    %1724 = vmatprep.subr.mxu0 0.0
    %1725 = vmatpush2.msra.mxu0 0.0
    %1726 = vmatprep.subr.mxu0 0.0
    %1727 = vmatpush2.msra.mxu0 0.0
    %1728 = vmatprep.subr.mxu0 0.0
    %1729 = vmatpush2.msra.mxu0 0.0
    %1730 = vmatprep.subr.mxu0 0.0
    %1731 = vmatpush2.msra.mxu0 0.0
    %1732 = vmatprep.subr.mxu0 0.0
    %1733 = vmatpush2.msra.mxu0 0.0
    %1734 = vmatprep.subr.mxu0 0.0
    %1735 = vmatpush2.msra.mxu0 0.0
    %1736 = vmatprep.subr.mxu0 0.0
    %1737 = vmatpush2.msra.mxu0 0.0
    %1738 = vmatprep.subr.mxu0 0.0
    %1739 = vmatpush2.msra.mxu0 0.0
    %1740 = vmatprep.subr.mxu0 0.0
    %1741 = vmatpush2.msra.mxu0 0.0
    %1742 = vmatprep.mubr.f32.mxu0 0.0
    %1743 = vmatmul.mubr.f32.gmra.mxu0 %v1676
    %v1744 = vpop.f32.mrf.mxu0
    %v1745 = vadd.f32 %v1674, %v1744
    %v1746 = vpop.f32.mrf.mxu0
    %1747 = vdwg.mxu0
    %1748 = vmax.xlane.f32.xlu0 %v1745
    %v1749 = vpop.xlane.xlu0 %1748
    %v1750 = vsub.f32 %v1745, %v1749
    %v1751 = vmul.f32 %v1750, 1.442695
    %v1752 = vpow.pop %v1751
    %1753 = vadd.xlane.f32.xlu0 %v1752
    %v1754 = vpop.xlane.xlu0 %1753
    %v1755 = vlog2.pop %v1754
    %v1756 = vmul.f32 %v1755, 0.6931472
    %v1757 = vadd.f32 %v1756, %v1749
    %v1758 = vsub.f32 %v1757, %v1745
    %v1759 = vmul.f32 %v33, %v1758
    %1760 = vadd.xlane.f32.xlu0 %v1759
    %v1761 = vpop.xlane.xlu0 %1760
    %v1762 = vrot.slane %v1761, 4
    %v1763 = vadd.f32 %v1761, %v1762
    %v1764 = vrot.slane %v1763, 2
    %v1765 = vadd.f32 %v1763, %v1764
    %v1766 = vrot.slane %v1765, 1
    %v1767 = vadd.f32 %v1765, %v1766
    %1768 = vst [vmem:[#allocation2] sm:$0xff] %v1745
    %1769 = vst [vmem:[#allocation2 + $0x8] sm:$0xff] %v1767
    // Predicated region
    $region14: #{tpu_custom_call.1} parent=1 // pred_check
      _
    $region15: #{tpu_custom_call.1} parent=1 // pred_check_branch
      %1771 = sbr.rel (0) target = $region17
    $region16: #{tpu_custom_call.1} parent=1 // pred_region
      %s1773 = ssub.s32 256, 256
      %1774 = vsyncadd [#allocation3], %s1773
      %s1775 = sshll.u32 [#allocation2], 4
      %s1776 = int_to_ptr.vmem [resolvable:$true] %s1775
      %1781 = dma.vmem_to_hbm [thread:$0]  %s1776, 256, %s3, [#allocation3], 128, 128, 8
    $region17: #{tpu_custom_call.1} parent=1 // pred_fallthru
      _
    // Predicated region
    $region18: #{tpu_custom_call.1} parent=1 // pred_check
      _
    $region19: #{tpu_custom_call.1} parent=1 // pred_check_branch
      %1783 = sbr.rel (0) target = $region21
    $region20: #{tpu_custom_call.1} parent=1 // pred_region
      %1784 = dma.done [#allocation3], 256
    $region21: #{tpu_custom_call.1} parent=1 // pred_fallthru
      _
    %1785 = vsyncpa [#allocation3], 1

</llo_original>
